<compile_context>
chip_gen: v7x
topology: tpu7x:2x2x1
jax: 0.10.0
libtpu: 0.0.40
codegen_flags: <defaults>
</compile_context>

<pallas_src>
import functools

import jax
import jax.numpy as jnp
from jax.experimental import pallas as pl
from jax.experimental.pallas import tpu as pltpu

# Problem sizes consistent with ResidualBlock(in_channels=8, kernel_size=3).
N, C, H, W = 2, 8, 16, 16
K = 3
NH = N * H                 # 32  slab rows   (sublane axis)
WC = W * C                 # 128 slab lanes  (lane axis, fully dense)
NHW = N * H * W            # 512 samples per channel for BatchNorm
EPS = 1e-5                 # nn.BatchNorm2d default eps


# ----------------------------------------------------------------------------
# Wrapper-side constant / weight expansion (tiny one-time JAX ops).
# ----------------------------------------------------------------------------
def _conv_bands(w_hwio):
    """HWIO (K,K,C,C) -> (K, W*C, W*C) block-tridiagonal band matrices.

    bands[kh][w_in*C+ci, w_out*C+co] = w[kh, kw, ci, co] with kw = w_in - w_out + 1,
    zero elsewhere (the zeros ARE the width 'SAME' padding).
    """
    bands = []
    for kh in range(K):
        m = jnp.zeros((WC, WC), jnp.float32)
        for kw in range(K):
            sel = jnp.eye(W, k=1 - kw, dtype=jnp.float32)   # w_out = w_in + (1 - kw)
            m = m + jnp.kron(sel, w_hwio[kh, kw])
        bands.append(m)
    return jnp.stack(bands)                                  # (3, 128, 128)


def _shift_mats():
    """Row-shift matrices over the (N*H) slab rows, batch/height halo baked in."""
    ri = jnp.arange(NH)[:, None]
    rj = jnp.arange(NH)[None, :]
    s_up = ((rj == ri - 1) & (ri % H != 0)).astype(jnp.float32)        # reads row h-1
    s_dn = ((rj == ri + 1) & (ri % H != H - 1)).astype(jnp.float32)    # reads row h+1
    return s_up, s_dn                                        # (32, 32) each


def _bn_mats():
    """MXU reduction matrices for BatchNorm batch statistics.

    red  (2, 2*NH): row 0 averages y over slab rows, row 1 averages y*y.
    gsum (WC, WC) : sums the W width-groups per channel and broadcasts the result
                    back into the tiled (w*C + c) lane layout.
    """
    red = jnp.zeros((2, 2 * NH), jnp.float32)
    red = red.at[0, :NH].set(1.0 / NHW)
    red = red.at[1, NH:].set(1.0 / NHW)
    gsum = jnp.kron(jnp.ones((W, W), jnp.float32), jnp.eye(C, dtype=jnp.float32))
    return red, gsum


def _tile_c(v):
    """(1, C) per-channel vector -> (1, W*C) tiled to the slab lane layout."""
    return jnp.tile(v.reshape(1, C), (1, W))


# ----------------------------------------------------------------------------
# The fused kernel: conv+BN+ReLU -> conv+BN+ReLU -> +x -> ReLU, all in VMEM.
# ----------------------------------------------------------------------------
def residual_block_kernel(x_ref, su_ref, sd_ref,
                          b1_ref, g1_ref, be1_ref,
                          b2_ref, g2_ref, be2_ref,
                          red_ref, gsum_ref, o_ref):
    x = x_ref[...]                                           # (NH, WC) = (32, 128)

    def conv(h, bands_ref):
        # Height taps via shift matmuls (halo zeros baked into S_up/S_dn),
        # width taps + channel mix via the banded weight matmuls.
        up = jnp.dot(su_ref[...], h, preferred_element_type=jnp.float32)
        dn = jnp.dot(sd_ref[...], h, preferred_element_type=jnp.float32)
        taps = (up, h, dn)
        y = jnp.zeros_like(h)
        for kh in range(K):
            y = y + jnp.dot(taps[kh], bands_ref[kh],
                            preferred_element_type=jnp.float32)
        return y                                             # (NH, WC)

    def bn_relu(y, gamma, beta):
        # mean / E[y^2] per channel, computed on the MXU and delivered already
        # broadcast into the tiled (1, WC) lane layout.
        ystack = jnp.concatenate([y, y * y], axis=0)         # (2*NH, WC)
        stats = jnp.dot(
            jnp.dot(red_ref[...], ystack, preferred_element_type=jnp.float32),
            gsum_ref[...], preferred_element_type=jnp.float32)   # (2, WC)
        mean = stats[0:1, :]
        var = stats[1:2, :] - mean * mean                    # biased variance
        s = gamma * jax.lax.rsqrt(var + EPS)                 # rsqrt -> EUP slot
        t = beta - mean * s
        return jnp.maximum(y * s + t, 0.0)                   # one FMA + ReLU

    h1 = bn_relu(conv(x, b1_ref), g1_ref[...], be1_ref[...])
    h2 = bn_relu(conv(h1, b2_ref), g2_ref[...], be2_ref[...])

    # Residual add + final ReLU; full-width (32,128) unmasked store.
    o_ref[...] = jnp.maximum(x + h2, 0.0)


_vmem = functools.partial(pl.BlockSpec, memory_space=pltpu.MemorySpace.VMEM)


def residual_block(x_nchw, params):
    """Matches ResidualBlock.forward: relu(x + CB2(CB1(x))), NCHW in/out.

    Conv2d biases (params['b1'], params['b2']) are intentionally NOT passed to the
    kernel: a per-channel constant added before training-mode BatchNorm is exactly
    cancelled by the mean subtraction, so it is dead work.
    """
    # NCHW -> NHWC -> slab. The NHWC->slab reshape is free (same memory order);
    # only the transpose is a real (16 KB) relayout, forced by the NCHW interface.
    x = jnp.transpose(x_nchw, (0, 2, 3, 1)).astype(jnp.float32)
    x_slab = x.reshape(NH, WC)

    bands1 = _conv_bands(params["w1"])
    bands2 = _conv_bands(params["w2"])
    s_up, s_dn = _shift_mats()
    red, gsum = _bn_mats()

    g1t, be1t = _tile_c(params["g1"]), _tile_c(params["be1"])
    g2t, be2t = _tile_c(params["g2"]), _tile_c(params["be2"])

    out = pl.pallas_call(
        residual_block_kernel,
        out_shape=jax.ShapeDtypeStruct((NH, WC), jnp.float32),
        in_specs=[_vmem()] * 11,
        out_specs=_vmem(),
    )(x_slab, s_up, s_dn, bands1, g1t, be1t, bands2, g2t, be2t, red, gsum)

    return jnp.transpose(out.reshape(N, H, W, C), (0, 3, 1, 2))   # -> NCHW


# ----------------------------------------------------------------------------
# Pure-JAX reference (conv bias included) for correctness checking.
# ----------------------------------------------------------------------------
def _reference(x_nchw, params):
    x = jnp.transpose(x_nchw, (0, 2, 3, 1)).astype(jnp.float32)

    def block(h, w, b, g, be):
        y = jax.lax.conv_general_dilated(
            h, w, window_strides=(1, 1), padding="SAME",
            dimension_numbers=("NHWC", "HWIO", "NHWC")) + b
        mean = jnp.mean(y, axis=(0, 1, 2), keepdims=True)
        var = jnp.mean(jnp.square(y - mean), axis=(0, 1, 2), keepdims=True)
        return jnp.maximum(g * (y - mean) * jax.lax.rsqrt(var + EPS) + be, 0.0)

    h1 = block(x, params["w1"], params["b1"], params["g1"], params["be1"])
    h2 = block(h1, params["w2"], params["b2"], params["g2"], params["be2"])
    return jnp.transpose(jnp.maximum(x + h2, 0.0), (0, 3, 1, 2))


if __name__ == "__main__":
    key = jax.random.PRNGKey(0)
    ks = jax.random.split(key, 9)
    scale = 1.0 / float(C * K * K) ** 0.5

    params = {
        "w1": scale * jax.random.normal(ks[0], (K, K, C, C), jnp.float32),  # HWIO
        "b1": scale * jax.random.normal(ks[1], (1, C), jnp.float32),
        "g1": 1.0 + 0.1 * jax.random.normal(ks[2], (1, C), jnp.float32),
        "be1": 0.1 * jax.random.normal(ks[3], (1, C), jnp.float32),
        "w2": scale * jax.random.normal(ks[4], (K, K, C, C), jnp.float32),
        "b2": scale * jax.random.normal(ks[5], (1, C), jnp.float32),
        "g2": 1.0 + 0.1 * jax.random.normal(ks[6], (1, C), jnp.float32),
        "be2": 0.1 * jax.random.normal(ks[7], (1, C), jnp.float32),
    }
    x = jax.random.normal(ks[8], (N, C, H, W), jnp.float32)

    out = jax.jit(residual_block)(x, params)
    out = jax.block_until_ready(out)

    ref = _reference(x, params)
    assert out.shape == (N, C, H, W)
    assert jnp.allclose(out, ref, atol=1e-4, rtol=1e-4)
    print("KERNEL_OK")
</pallas_src>

<mosaic_0001>
module attributes {stable_mosaic.version = 11 : i64} {
  func.func @residual_block_kernel(%arg0: memref<32x128xf32, #tpu.memory_space<vmem>>, %arg1: memref<32x32xf32, #tpu.memory_space<vmem>>, %arg2: memref<32x32xf32, #tpu.memory_space<vmem>>, %arg3: memref<3x128x128xf32, #tpu.memory_space<vmem>>, %arg4: memref<1x128xf32, #tpu.memory_space<vmem>>, %arg5: memref<1x128xf32, #tpu.memory_space<vmem>>, %arg6: memref<3x128x128xf32, #tpu.memory_space<vmem>>, %arg7: memref<1x128xf32, #tpu.memory_space<vmem>>, %arg8: memref<1x128xf32, #tpu.memory_space<vmem>>, %arg9: memref<2x64xf32, #tpu.memory_space<vmem>>, %arg10: memref<128x128xf32, #tpu.memory_space<vmem>>, %arg11: memref<32x128xf32, #tpu.memory_space<vmem>>) attributes {dimension_semantics = [], scalar_prefetch = 0 : i64, scratch_operands = 0 : i64, tpu.core_type = #tpu.core_type<tc>} {
    %c0 = arith.constant 0 : index
    %c0_0 = arith.constant 0 : index
    %0 = vector.load %arg0[%c0, %c0_0] : memref<32x128xf32, #tpu.memory_space<vmem>>, vector<32x128xf32>
    %c0_1 = arith.constant 0 : index
    %c0_2 = arith.constant 0 : index
    %1 = vector.load %arg1[%c0_1, %c0_2] : memref<32x32xf32, #tpu.memory_space<vmem>>, vector<32x32xf32>
    %cst = arith.constant dense<0.000000e+00> : vector<32x128xf32>
    %2 = tpu.matmul %1, %0, %cst {dimension_numbers = #tpu.dot_dimension_numbers<[1], [0], [0], [1], [0, 0, 1, 1], [], []>} : vector<32x32xf32>, vector<32x128xf32>, vector<32x128xf32> -> vector<32x128xf32>
    %c0_3 = arith.constant 0 : index
    %c0_4 = arith.constant 0 : index
    %3 = vector.load %arg2[%c0_3, %c0_4] : memref<32x32xf32, #tpu.memory_space<vmem>>, vector<32x32xf32>
    %cst_5 = arith.constant dense<0.000000e+00> : vector<32x128xf32>
    %4 = tpu.matmul %3, %0, %cst_5 {dimension_numbers = #tpu.dot_dimension_numbers<[1], [0], [0], [1], [0, 0, 1, 1], [], []>} : vector<32x32xf32>, vector<32x128xf32>, vector<32x128xf32> -> vector<32x128xf32>
    %cst_6 = arith.constant 0.000000e+00 : f32
    %5 = vector.broadcast %cst_6 : f32 to vector<32x128xf32>
    %c0_7 = arith.constant 0 : index
    %c0_8 = arith.constant 0 : index
    %c0_9 = arith.constant 0 : index
    %6 = vector.load %arg3[%c0_7, %c0_8, %c0_9] : memref<3x128x128xf32, #tpu.memory_space<vmem>>, vector<1x128x128xf32>
    %7 = vector.shape_cast %6 : vector<1x128x128xf32> to vector<128x128xf32>
    %cst_10 = arith.constant dense<0.000000e+00> : vector<32x128xf32>
    %8 = tpu.matmul %2, %7, %cst_10 {dimension_numbers = #tpu.dot_dimension_numbers<[1], [0], [0], [1], [0, 0, 1, 1], [], []>} : vector<32x128xf32>, vector<128x128xf32>, vector<32x128xf32> -> vector<32x128xf32>
    %9 = arith.addf %5, %8 : vector<32x128xf32>
    %c1 = arith.constant 1 : index
    %c0_11 = arith.constant 0 : index
    %c0_12 = arith.constant 0 : index
    %10 = vector.load %arg3[%c1, %c0_11, %c0_12] : memref<3x128x128xf32, #tpu.memory_space<vmem>>, vector<1x128x128xf32>
    %11 = vector.shape_cast %10 : vector<1x128x128xf32> to vector<128x128xf32>
    %cst_13 = arith.constant dense<0.000000e+00> : vector<32x128xf32>
    %12 = tpu.matmul %0, %11, %cst_13 {dimension_numbers = #tpu.dot_dimension_numbers<[1], [0], [0], [1], [0, 0, 1, 1], [], []>} : vector<32x128xf32>, vector<128x128xf32>, vector<32x128xf32> -> vector<32x128xf32>
    %13 = arith.addf %9, %12 : vector<32x128xf32>
    %c2 = arith.constant 2 : index
    %c0_14 = arith.constant 0 : index
    %c0_15 = arith.constant 0 : index
    %14 = vector.load %arg3[%c2, %c0_14, %c0_15] : memref<3x128x128xf32, #tpu.memory_space<vmem>>, vector<1x128x128xf32>
    %15 = vector.shape_cast %14 : vector<1x128x128xf32> to vector<128x128xf32>
    %cst_16 = arith.constant dense<0.000000e+00> : vector<32x128xf32>
    %16 = tpu.matmul %4, %15, %cst_16 {dimension_numbers = #tpu.dot_dimension_numbers<[1], [0], [0], [1], [0, 0, 1, 1], [], []>} : vector<32x128xf32>, vector<128x128xf32>, vector<32x128xf32> -> vector<32x128xf32>
    %17 = arith.addf %13, %16 : vector<32x128xf32>
    %c0_17 = arith.constant 0 : index
    %c0_18 = arith.constant 0 : index
    %18 = vector.load %arg4[%c0_17, %c0_18] : memref<1x128xf32, #tpu.memory_space<vmem>>, vector<1x128xf32>
    %c0_19 = arith.constant 0 : index
    %c0_20 = arith.constant 0 : index
    %19 = vector.load %arg5[%c0_19, %c0_20] : memref<1x128xf32, #tpu.memory_space<vmem>>, vector<1x128xf32>
    %20 = arith.mulf %17, %17 : vector<32x128xf32>
    %21 = tpu.concatenate %17, %20 in 0 : vector<32x128xf32>, vector<32x128xf32> -> vector<64x128xf32>
    %c0_21 = arith.constant 0 : index
    %c0_22 = arith.constant 0 : index
    %22 = vector.load %arg9[%c0_21, %c0_22] : memref<2x64xf32, #tpu.memory_space<vmem>>, vector<2x64xf32>
    %cst_23 = arith.constant dense<0.000000e+00> : vector<2x128xf32>
    %23 = tpu.matmul %22, %21, %cst_23 {dimension_numbers = #tpu.dot_dimension_numbers<[1], [0], [0], [1], [0, 0, 1, 1], [], []>} : vector<2x64xf32>, vector<64x128xf32>, vector<2x128xf32> -> vector<2x128xf32>
    %c0_24 = arith.constant 0 : index
    %c0_25 = arith.constant 0 : index
    %24 = vector.load %arg10[%c0_24, %c0_25] : memref<128x128xf32, #tpu.memory_space<vmem>>, vector<128x128xf32>
    %cst_26 = arith.constant dense<0.000000e+00> : vector<2x128xf32>
    %25 = tpu.matmul %23, %24, %cst_26 {dimension_numbers = #tpu.dot_dimension_numbers<[1], [0], [0], [1], [0, 0, 1, 1], [], []>} : vector<2x128xf32>, vector<128x128xf32>, vector<2x128xf32> -> vector<2x128xf32>
    %26 = vector.extract_strided_slice %25 {offsets = [0, 0], sizes = [1, 128], strides = [1, 1]} : vector<2x128xf32> to vector<1x128xf32>
    %27 = vector.extract_strided_slice %25 {offsets = [1, 0], sizes = [1, 128], strides = [1, 1]} : vector<2x128xf32> to vector<1x128xf32>
    %28 = arith.mulf %26, %26 : vector<1x128xf32>
    %29 = arith.subf %27, %28 : vector<1x128xf32>
    %cst_27 = arith.constant 9.99999974E-6 : f32
    %30 = vector.broadcast %cst_27 : f32 to vector<1x128xf32>
    %31 = arith.addf %29, %30 : vector<1x128xf32>
    %32 = math.rsqrt %31 : vector<1x128xf32>
    %33 = arith.mulf %18, %32 : vector<1x128xf32>
    %34 = arith.mulf %26, %33 : vector<1x128xf32>
    %35 = arith.subf %19, %34 : vector<1x128xf32>
    %36 = vector.broadcast %33 : vector<1x128xf32> to vector<32x128xf32>
    %37 = arith.mulf %17, %36 : vector<32x128xf32>
    %38 = vector.broadcast %35 : vector<1x128xf32> to vector<32x128xf32>
    %39 = arith.addf %37, %38 : vector<32x128xf32>
    %cst_28 = arith.constant 0.000000e+00 : f32
    %40 = vector.broadcast %cst_28 : f32 to vector<32x128xf32>
    %41 = arith.maximumf %39, %40 : vector<32x128xf32>
    %c0_29 = arith.constant 0 : index
    %c0_30 = arith.constant 0 : index
    %42 = vector.load %arg1[%c0_29, %c0_30] : memref<32x32xf32, #tpu.memory_space<vmem>>, vector<32x32xf32>
    %cst_31 = arith.constant dense<0.000000e+00> : vector<32x128xf32>
    %43 = tpu.matmul %42, %41, %cst_31 {dimension_numbers = #tpu.dot_dimension_numbers<[1], [0], [0], [1], [0, 0, 1, 1], [], []>} : vector<32x32xf32>, vector<32x128xf32>, vector<32x128xf32> -> vector<32x128xf32>
    %c0_32 = arith.constant 0 : index
    %c0_33 = arith.constant 0 : index
    %44 = vector.load %arg2[%c0_32, %c0_33] : memref<32x32xf32, #tpu.memory_space<vmem>>, vector<32x32xf32>
    %cst_34 = arith.constant dense<0.000000e+00> : vector<32x128xf32>
    %45 = tpu.matmul %44, %41, %cst_34 {dimension_numbers = #tpu.dot_dimension_numbers<[1], [0], [0], [1], [0, 0, 1, 1], [], []>} : vector<32x32xf32>, vector<32x128xf32>, vector<32x128xf32> -> vector<32x128xf32>
    %cst_35 = arith.constant 0.000000e+00 : f32
    %46 = vector.broadcast %cst_35 : f32 to vector<32x128xf32>
    %c0_36 = arith.constant 0 : index
    %c0_37 = arith.constant 0 : index
    %c0_38 = arith.constant 0 : index
    %47 = vector.load %arg6[%c0_36, %c0_37, %c0_38] : memref<3x128x128xf32, #tpu.memory_space<vmem>>, vector<1x128x128xf32>
    %48 = vector.shape_cast %47 : vector<1x128x128xf32> to vector<128x128xf32>
    %cst_39 = arith.constant dense<0.000000e+00> : vector<32x128xf32>
    %49 = tpu.matmul %43, %48, %cst_39 {dimension_numbers = #tpu.dot_dimension_numbers<[1], [0], [0], [1], [0, 0, 1, 1], [], []>} : vector<32x128xf32>, vector<128x128xf32>, vector<32x128xf32> -> vector<32x128xf32>
    %50 = arith.addf %46, %49 : vector<32x128xf32>
    %c1_40 = arith.constant 1 : index
    %c0_41 = arith.constant 0 : index
    %c0_42 = arith.constant 0 : index
    %51 = vector.load %arg6[%c1_40, %c0_41, %c0_42] : memref<3x128x128xf32, #tpu.memory_space<vmem>>, vector<1x128x128xf32>
    %52 = vector.shape_cast %51 : vector<1x128x128xf32> to vector<128x128xf32>
    %cst_43 = arith.constant dense<0.000000e+00> : vector<32x128xf32>
    %53 = tpu.matmul %41, %52, %cst_43 {dimension_numbers = #tpu.dot_dimension_numbers<[1], [0], [0], [1], [0, 0, 1, 1], [], []>} : vector<32x128xf32>, vector<128x128xf32>, vector<32x128xf32> -> vector<32x128xf32>
    %54 = arith.addf %50, %53 : vector<32x128xf32>
    %c2_44 = arith.constant 2 : index
    %c0_45 = arith.constant 0 : index
    %c0_46 = arith.constant 0 : index
    %55 = vector.load %arg6[%c2_44, %c0_45, %c0_46] : memref<3x128x128xf32, #tpu.memory_space<vmem>>, vector<1x128x128xf32>
    %56 = vector.shape_cast %55 : vector<1x128x128xf32> to vector<128x128xf32>
    %cst_47 = arith.constant dense<0.000000e+00> : vector<32x128xf32>
    %57 = tpu.matmul %45, %56, %cst_47 {dimension_numbers = #tpu.dot_dimension_numbers<[1], [0], [0], [1], [0, 0, 1, 1], [], []>} : vector<32x128xf32>, vector<128x128xf32>, vector<32x128xf32> -> vector<32x128xf32>
    %58 = arith.addf %54, %57 : vector<32x128xf32>
    %c0_48 = arith.constant 0 : index
    %c0_49 = arith.constant 0 : index
    %59 = vector.load %arg7[%c0_48, %c0_49] : memref<1x128xf32, #tpu.memory_space<vmem>>, vector<1x128xf32>
    %c0_50 = arith.constant 0 : index
    %c0_51 = arith.constant 0 : index
    %60 = vector.load %arg8[%c0_50, %c0_51] : memref<1x128xf32, #tpu.memory_space<vmem>>, vector<1x128xf32>
    %61 = arith.mulf %58, %58 : vector<32x128xf32>
    %62 = tpu.concatenate %58, %61 in 0 : vector<32x128xf32>, vector<32x128xf32> -> vector<64x128xf32>
    %c0_52 = arith.constant 0 : index
    %c0_53 = arith.constant 0 : index
    %63 = vector.load %arg9[%c0_52, %c0_53] : memref<2x64xf32, #tpu.memory_space<vmem>>, vector<2x64xf32>
    %cst_54 = arith.constant dense<0.000000e+00> : vector<2x128xf32>
    %64 = tpu.matmul %63, %62, %cst_54 {dimension_numbers = #tpu.dot_dimension_numbers<[1], [0], [0], [1], [0, 0, 1, 1], [], []>} : vector<2x64xf32>, vector<64x128xf32>, vector<2x128xf32> -> vector<2x128xf32>
    %c0_55 = arith.constant 0 : index
    %c0_56 = arith.constant 0 : index
    %65 = vector.load %arg10[%c0_55, %c0_56] : memref<128x128xf32, #tpu.memory_space<vmem>>, vector<128x128xf32>
    %cst_57 = arith.constant dense<0.000000e+00> : vector<2x128xf32>
    %66 = tpu.matmul %64, %65, %cst_57 {dimension_numbers = #tpu.dot_dimension_numbers<[1], [0], [0], [1], [0, 0, 1, 1], [], []>} : vector<2x128xf32>, vector<128x128xf32>, vector<2x128xf32> -> vector<2x128xf32>
    %67 = vector.extract_strided_slice %66 {offsets = [0, 0], sizes = [1, 128], strides = [1, 1]} : vector<2x128xf32> to vector<1x128xf32>
    %68 = vector.extract_strided_slice %66 {offsets = [1, 0], sizes = [1, 128], strides = [1, 1]} : vector<2x128xf32> to vector<1x128xf32>
    %69 = arith.mulf %67, %67 : vector<1x128xf32>
    %70 = arith.subf %68, %69 : vector<1x128xf32>
    %cst_58 = arith.constant 9.99999974E-6 : f32
    %71 = vector.broadcast %cst_58 : f32 to vector<1x128xf32>
    %72 = arith.addf %70, %71 : vector<1x128xf32>
    %73 = math.rsqrt %72 : vector<1x128xf32>
    %74 = arith.mulf %59, %73 : vector<1x128xf32>
    %75 = arith.mulf %67, %74 : vector<1x128xf32>
    %76 = arith.subf %60, %75 : vector<1x128xf32>
    %77 = vector.broadcast %74 : vector<1x128xf32> to vector<32x128xf32>
    %78 = arith.mulf %58, %77 : vector<32x128xf32>
    %79 = vector.broadcast %76 : vector<1x128xf32> to vector<32x128xf32>
    %80 = arith.addf %78, %79 : vector<32x128xf32>
    %cst_59 = arith.constant 0.000000e+00 : f32
    %81 = vector.broadcast %cst_59 : f32 to vector<32x128xf32>
    %82 = arith.maximumf %80, %81 : vector<32x128xf32>
    %83 = arith.addf %0, %82 : vector<32x128xf32>
    %cst_60 = arith.constant 0.000000e+00 : f32
    %84 = vector.broadcast %cst_60 : f32 to vector<32x128xf32>
    %85 = arith.maximumf %83, %84 : vector<32x128xf32>
    %c0_61 = arith.constant 0 : index
    %c0_62 = arith.constant 0 : index
    %86 = vector.load %arg11[%c0_61, %c0_62] : memref<32x128xf32, #tpu.memory_space<vmem>>, vector<32x128xf32>
    tpu.vector_store %arg11[%c0_61, %c0_62], %85 {strides = array<i32>} : memref<32x128xf32, #tpu.memory_space<vmem>>, vector<32x128xf32>,
    return
  }
}

</mosaic_0001>

<llo_original>
// kernel: residual_block.1
$region0: #{residual_block.1}
  #allocation0 [shape = 'u32[]', space=smem, size = 0x4, offset = 0x4, fixed_abs, tag = 'smem constant byte address 0x4 - core index']
  #allocation1 [shape = 'u32[144,128]{1,0:T(1,128)}', space=vmem, size = 0x12000, scoped, tag = 'internal scratch']
  %s0 = inlined_call_operand.vmem [shape: f32[32,128], index: 0, kind: input, shape index: {}]
  %s1 = inlined_call_operand.vmem [shape: f32[32,32], index: 1, kind: input, shape index: {}]
  %s2 = inlined_call_operand.vmem [shape: f32[32,32], index: 2, kind: input, shape index: {}]
  %s3 = inlined_call_operand.vmem [shape: f32[3,128,128], index: 3, kind: input, shape index: {}]
  %s4 = inlined_call_operand.vmem [shape: f32[1,128], index: 4, kind: input, shape index: {}]
  %s5 = inlined_call_operand.vmem [shape: f32[1,128], index: 5, kind: input, shape index: {}]
  %s6 = inlined_call_operand.vmem [shape: f32[3,128,128], index: 6, kind: input, shape index: {}]
  %s7 = inlined_call_operand.vmem [shape: f32[1,128], index: 7, kind: input, shape index: {}]
  %s8 = inlined_call_operand.vmem [shape: f32[1,128], index: 8, kind: input, shape index: {}]
  %s9 = inlined_call_operand.vmem [shape: f32[2,64], index: 9, kind: input, shape index: {}]
  %s10 = inlined_call_operand.vmem [shape: f32[128,128], index: 10, kind: input, shape index: {}]
  %s11 = inlined_call_operand.vmem [shape: f32[32,128], index: 11, kind: output, shape index: {}]
  %s12 = sld [smem:[#allocation0]]
  $region54: #{residual_block.1} parent=0
    _
  %s14 = ssub.s32 1, %s12
  %s15 = scalar_select 0, %s14, %s12
  // Predicated region
  $region2: #{residual_block.1} parent=0 // pred_check
    _
  $region3: #{residual_block.1} parent=0 // pred_check_branch
    %17 = sbr.rel (0) target = $region5
  $region4: #{residual_block.1} parent=0 // pred_region
    _
  $region5: #{residual_block.1} parent=0 // pred_fallthru
    _
  // Predicated region
  $region6: #{residual_block.1} parent=0 // pred_check
    _
  $region7: #{residual_block.1} parent=0 // pred_check_branch
    %19 = sbr.rel (0) target = $region9
  $region8: #{residual_block.1} parent=0 // pred_region
    _
  $region9: #{residual_block.1} parent=0 // pred_fallthru
    _
  // Predicated region
  $region10: #{residual_block.1} parent=0 // pred_check
    _
  $region11: #{residual_block.1} parent=0 // pred_check_branch
    %21 = sbr.rel (0) target = $region13
  $region12: #{residual_block.1} parent=0 // pred_region
    _
  $region13: #{residual_block.1} parent=0 // pred_fallthru
    _
  // Predicated region
  $region14: #{residual_block.1} parent=0 // pred_check
    _
  $region15: #{residual_block.1} parent=0 // pred_check_branch
    %23 = sbr.rel (0) target = $region17
  $region16: #{residual_block.1} parent=0 // pred_region
    _
  $region17: #{residual_block.1} parent=0 // pred_fallthru
    _
  // Predicated region
  $region18: #{residual_block.1} parent=0 // pred_check
    _
  $region19: #{residual_block.1} parent=0 // pred_check_branch
    %25 = sbr.rel (0) target = $region21
  $region20: #{residual_block.1} parent=0 // pred_region
    _
  $region21: #{residual_block.1} parent=0 // pred_fallthru
    _
  // Predicated region
  $region22: #{residual_block.1} parent=0 // pred_check
    _
  $region23: #{residual_block.1} parent=0 // pred_check_branch
    %27 = sbr.rel (0) target = $region25
  $region24: #{residual_block.1} parent=0 // pred_region
    _
  $region25: #{residual_block.1} parent=0 // pred_fallthru
    _
  // Predicated region
  $region26: #{residual_block.1} parent=0 // pred_check
    _
  $region27: #{residual_block.1} parent=0 // pred_check_branch
    %29 = sbr.rel (0) target = $region29
  $region28: #{residual_block.1} parent=0 // pred_region
    _
  $region29: #{residual_block.1} parent=0 // pred_fallthru
    _
  // Predicated region
  $region30: #{residual_block.1} parent=0 // pred_check
    _
  $region31: #{residual_block.1} parent=0 // pred_check_branch
    %31 = sbr.rel (0) target = $region33
  $region32: #{residual_block.1} parent=0 // pred_region
    _
  $region33: #{residual_block.1} parent=0 // pred_fallthru
    _
  // Predicated region
  $region34: #{residual_block.1} parent=0 // pred_check
    _
  $region35: #{residual_block.1} parent=0 // pred_check_branch
    %33 = sbr.rel (0) target = $region37
  $region36: #{residual_block.1} parent=0 // pred_region
    _
  $region37: #{residual_block.1} parent=0 // pred_fallthru
    _
  // Predicated region
  $region38: #{residual_block.1} parent=0 // pred_check
    _
  $region39: #{residual_block.1} parent=0 // pred_check_branch
    %35 = sbr.rel (0) target = $region41
  $region40: #{residual_block.1} parent=0 // pred_region
    _
  $region41: #{residual_block.1} parent=0 // pred_fallthru
    _
  // Predicated region
  $region42: #{residual_block.1} parent=0 // pred_check
    _
  $region43: #{residual_block.1} parent=0 // pred_check_branch
    %37 = sbr.rel (0) target = $region45
  $region44: #{residual_block.1} parent=0 // pred_region
    _
  $region45: #{residual_block.1} parent=0 // pred_fallthru
    _
  %v38 = vld [vmem:[%s0] sm:$0xff]
  %v39 = vld [vmem:[%s0 + $0x8] sm:$0xff]
  %v40 = vld [vmem:[%s0 + $0x10] sm:$0xff]
  %v41 = vld [vmem:[%s0 + $0x18] sm:$0xff]
  %v42 = vld [vmem:[%s1] sm:$0xff]
  %v43 = vld [vmem:[%s1 + $0x8] sm:$0xff]
  %v44 = vld [vmem:[%s1 + $0x10] sm:$0xff]
  %v45 = vld [vmem:[%s1 + $0x18] sm:$0xff]
  %vm46 = vcmask 261120
  %v48 = vsel %vm46, %v42, 0
  %v51 = vsel %vm46, %v43, 0
  %v54 = vsel %vm46, %v44, 0
  %v57 = vsel %vm46, %v45, 0
  %59 = vmatprep.subr.mxu0 0.0
  %60 = vmatpush1.msra.mxu0 %v38
  %61 = vmatprep.subr.mxu0 0.0
  %62 = vmatpush1.msra.mxu0 %v39
  %63 = vmatprep.subr.mxu0 0.0
  %64 = vmatpush1.msra.mxu0 %v40
  %65 = vmatprep.subr.mxu0 0.0
  %66 = vmatpush1.msra.mxu0 %v41
  %67 = vmatprep.subr.mxu0 0.0
  %68 = vmatpush1.msra.mxu0 0.0
  %69 = vmatprep.subr.mxu0 0.0
  %70 = vmatpush1.msra.mxu0 0.0
  %71 = vmatprep.subr.mxu0 0.0
  %72 = vmatpush1.msra.mxu0 0.0
  %73 = vmatprep.subr.mxu0 0.0
  %74 = vmatpush1.msra.mxu0 0.0
  %75 = vmatprep.subr.mxu0 0.0
  %76 = vmatpush1.msra.mxu0 0.0
  %77 = vmatprep.subr.mxu0 0.0
  %78 = vmatpush1.msra.mxu0 0.0
  %79 = vmatprep.subr.mxu0 0.0
  %80 = vmatpush1.msra.mxu0 0.0
  %81 = vmatprep.subr.mxu0 0.0
  %82 = vmatpush1.msra.mxu0 0.0
  %83 = vmatprep.subr.mxu0 0.0
  %84 = vmatpush1.msra.mxu0 0.0
  %85 = vmatprep.subr.mxu0 0.0
  %86 = vmatpush1.msra.mxu0 0.0
  %87 = vmatprep.subr.mxu0 0.0
  %88 = vmatpush1.msra.mxu0 0.0
  %89 = vmatprep.subr.mxu0 0.0
  %90 = vmatpush1.msra.mxu0 0.0
  %91 = vmatprep.subr.mxu0 0.0
  %92 = vmatpush1.msra.mxu0 0.0
  %93 = vmatprep.subr.mxu0 0.0
  %94 = vmatpush1.msra.mxu0 0.0
  %95 = vmatprep.subr.mxu0 0.0
  %96 = vmatpush1.msra.mxu0 0.0
  %97 = vmatprep.subr.mxu0 0.0
  %98 = vmatpush1.msra.mxu0 0.0
  %99 = vmatprep.subr.mxu0 0.0
  %100 = vmatpush1.msra.mxu0 0.0
  %101 = vmatprep.subr.mxu0 0.0
  %102 = vmatpush1.msra.mxu0 0.0
  %103 = vmatprep.subr.mxu0 0.0
  %104 = vmatpush1.msra.mxu0 0.0
  %105 = vmatprep.subr.mxu0 0.0
  %106 = vmatpush1.msra.mxu0 0.0
  %107 = vmatprep.subr.mxu0 0.0
  %108 = vmatpush1.msra.mxu0 0.0
  %109 = vmatprep.subr.mxu0 0.0
  %110 = vmatpush1.msra.mxu0 0.0
  %111 = vmatprep.subr.mxu0 0.0
  %112 = vmatpush1.msra.mxu0 0.0
  %113 = vmatprep.subr.mxu0 0.0
  %114 = vmatpush1.msra.mxu0 0.0
  %115 = vmatprep.subr.mxu0 0.0
  %116 = vmatpush1.msra.mxu0 0.0
  %117 = vmatprep.subr.mxu0 0.0
  %118 = vmatpush1.msra.mxu0 0.0
  %119 = vmatprep.subr.mxu0 0.0
  %120 = vmatpush1.msra.mxu0 0.0
  %121 = vmatprep.subr.mxu0 0.0
  %122 = vmatpush1.msra.mxu0 0.0
  %123 = vmatprep.mubr.f32.mxu0 0.0
  %124 = vmatmul.mubr.f32.gmra.mrb[0].mxu0 %v48
  %v125 = vpop.f32.mrb[0].mxu0
  %v126 = vadd.f32 0.0, %v125
  %v127 = vpop.f32.mrb[0].mxu0
  %128 = vmatprep.mubr.f32.mxu0 0.0
  %129 = vmatmul.mubr.f32.gmra.mrb[0].mxu0 %v51
  %v130 = vpop.f32.mrb[0].mxu0
  %v131 = vadd.f32 0.0, %v130
  %v132 = vpop.f32.mrb[0].mxu0
  %133 = vmatprep.mubr.f32.mxu0 0.0
  %134 = vmatmul.mubr.f32.gmra.mrb[0].mxu0 %v54
  %v135 = vpop.f32.mrb[0].mxu0
  %v136 = vadd.f32 0.0, %v135
  %v137 = vpop.f32.mrb[0].mxu0
  %138 = vmatprep.mubr.f32.mxu0 0.0
  %139 = vmatmul.mubr.f32.gmra.mrb[0].mxu0 %v57
  %v140 = vpop.f32.mrb[0].mxu0
  %v141 = vadd.f32 0.0, %v140
  %v142 = vpop.f32.mrb[0].mxu0
  %143 = vdwg.mxu0
  %v144 = vld [vmem:[%s2] sm:$0xff]
  %v145 = vld [vmem:[%s2 + $0x8] sm:$0xff]
  %v146 = vld [vmem:[%s2 + $0x10] sm:$0xff]
  %v147 = vld [vmem:[%s2 + $0x18] sm:$0xff]
  %v149 = vsel %vm46, %v144, 0
  %v152 = vsel %vm46, %v145, 0
  %v155 = vsel %vm46, %v146, 0
  %v158 = vsel %vm46, %v147, 0
  %160 = vmatprep.subr.mxu0 0.0
  %161 = vmatpush1.msra.mxu0 %v38
  %162 = vmatprep.subr.mxu0 0.0
  %163 = vmatpush1.msra.mxu0 %v39
  %164 = vmatprep.subr.mxu0 0.0
  %165 = vmatpush1.msra.mxu0 %v40
  %166 = vmatprep.subr.mxu0 0.0
  %167 = vmatpush1.msra.mxu0 %v41
  %168 = vmatprep.subr.mxu0 0.0
  %169 = vmatpush1.msra.mxu0 0.0
  %170 = vmatprep.subr.mxu0 0.0
  %171 = vmatpush1.msra.mxu0 0.0
  %172 = vmatprep.subr.mxu0 0.0
  %173 = vmatpush1.msra.mxu0 0.0
  %174 = vmatprep.subr.mxu0 0.0
  %175 = vmatpush1.msra.mxu0 0.0
  %176 = vmatprep.subr.mxu0 0.0
  %177 = vmatpush1.msra.mxu0 0.0
  %178 = vmatprep.subr.mxu0 0.0
  %179 = vmatpush1.msra.mxu0 0.0
  %180 = vmatprep.subr.mxu0 0.0
  %181 = vmatpush1.msra.mxu0 0.0
  %182 = vmatprep.subr.mxu0 0.0
  %183 = vmatpush1.msra.mxu0 0.0
  %184 = vmatprep.subr.mxu0 0.0
  %185 = vmatpush1.msra.mxu0 0.0
  %186 = vmatprep.subr.mxu0 0.0
  %187 = vmatpush1.msra.mxu0 0.0
  %188 = vmatprep.subr.mxu0 0.0
  %189 = vmatpush1.msra.mxu0 0.0
  %190 = vmatprep.subr.mxu0 0.0
  %191 = vmatpush1.msra.mxu0 0.0
  %192 = vmatprep.subr.mxu0 0.0
  %193 = vmatpush1.msra.mxu0 0.0
  %194 = vmatprep.subr.mxu0 0.0
  %195 = vmatpush1.msra.mxu0 0.0
  %196 = vmatprep.subr.mxu0 0.0
  %197 = vmatpush1.msra.mxu0 0.0
  %198 = vmatprep.subr.mxu0 0.0
  %199 = vmatpush1.msra.mxu0 0.0
  %200 = vmatprep.subr.mxu0 0.0
  %201 = vmatpush1.msra.mxu0 0.0
  %202 = vmatprep.subr.mxu0 0.0
  %203 = vmatpush1.msra.mxu0 0.0
  %204 = vmatprep.subr.mxu0 0.0
  %205 = vmatpush1.msra.mxu0 0.0
  %206 = vmatprep.subr.mxu0 0.0
  %207 = vmatpush1.msra.mxu0 0.0
  %208 = vmatprep.subr.mxu0 0.0
  %209 = vmatpush1.msra.mxu0 0.0
  %210 = vmatprep.subr.mxu0 0.0
  %211 = vmatpush1.msra.mxu0 0.0
  %212 = vmatprep.subr.mxu0 0.0
  %213 = vmatpush1.msra.mxu0 0.0
  %214 = vmatprep.subr.mxu0 0.0
  %215 = vmatpush1.msra.mxu0 0.0
  %216 = vmatprep.subr.mxu0 0.0
  %217 = vmatpush1.msra.mxu0 0.0
  %218 = vmatprep.subr.mxu0 0.0
  %219 = vmatpush1.msra.mxu0 0.0
  %220 = vmatprep.subr.mxu0 0.0
  %221 = vmatpush1.msra.mxu0 0.0
  %222 = vmatprep.subr.mxu0 0.0
  %223 = vmatpush1.msra.mxu0 0.0
  %224 = vmatprep.mubr.f32.mxu0 0.0
  %225 = vmatmul.mubr.f32.gmra.mrb[0].mxu0 %v149
  %v226 = vpop.f32.mrb[0].mxu0
  %v227 = vadd.f32 0.0, %v226
  %v228 = vpop.f32.mrb[0].mxu0
  %229 = vmatprep.mubr.f32.mxu0 0.0
  %230 = vmatmul.mubr.f32.gmra.mrb[0].mxu0 %v152
  %v231 = vpop.f32.mrb[0].mxu0
  %v232 = vadd.f32 0.0, %v231
  %v233 = vpop.f32.mrb[0].mxu0
  %234 = vmatprep.mubr.f32.mxu0 0.0
  %235 = vmatmul.mubr.f32.gmra.mrb[0].mxu0 %v155
  %v236 = vpop.f32.mrb[0].mxu0
  %v237 = vadd.f32 0.0, %v236
  %v238 = vpop.f32.mrb[0].mxu0
  %239 = vmatprep.mubr.f32.mxu0 0.0
  %240 = vmatmul.mubr.f32.gmra.mrb[0].mxu0 %v158
  %v241 = vpop.f32.mrb[0].mxu0
  %v242 = vadd.f32 0.0, %v241
  %v243 = vpop.f32.mrb[0].mxu0
  %244 = vdwg.mxu0
  %v245 = vld [vmem:[%s3] sm:$0xff]
  %v246 = vld [vmem:[%s3 + $0x8] sm:$0xff]
  %v247 = vld [vmem:[%s3 + $0x10] sm:$0xff]
  %v248 = vld [vmem:[%s3 + $0x18] sm:$0xff]
  %v249 = vld [vmem:[%s3 + $0x20] sm:$0xff]
  %v250 = vld [vmem:[%s3 + $0x28] sm:$0xff]
  %v251 = vld [vmem:[%s3 + $0x30] sm:$0xff]
  %v252 = vld [vmem:[%s3 + $0x38] sm:$0xff]
  %v253 = vld [vmem:[%s3 + $0x40] sm:$0xff]
  %v254 = vld [vmem:[%s3 + $0x48] sm:$0xff]
  %v255 = vld [vmem:[%s3 + $0x50] sm:$0xff]
  %v256 = vld [vmem:[%s3 + $0x58] sm:$0xff]
  %v257 = vld [vmem:[%s3 + $0x60] sm:$0xff]
  %v258 = vld [vmem:[%s3 + $0x68] sm:$0xff]
  %v259 = vld [vmem:[%s3 + $0x70] sm:$0xff]
  %v260 = vld [vmem:[%s3 + $0x78] sm:$0xff]
  %s261 = scalar_lea.vmem %s3, 128
  %v262 = vld [vmem:[%s261] sm:$0xff]
  %v263 = vld [vmem:[%s261 + $0x8] sm:$0xff]
  %v264 = vld [vmem:[%s261 + $0x10] sm:$0xff]
  %v265 = vld [vmem:[%s261 + $0x18] sm:$0xff]
  %v266 = vld [vmem:[%s261 + $0x20] sm:$0xff]
  %v267 = vld [vmem:[%s261 + $0x28] sm:$0xff]
  %v268 = vld [vmem:[%s261 + $0x30] sm:$0xff]
  %v269 = vld [vmem:[%s261 + $0x38] sm:$0xff]
  %v270 = vld [vmem:[%s261 + $0x40] sm:$0xff]
  %v271 = vld [vmem:[%s261 + $0x48] sm:$0xff]
  %v272 = vld [vmem:[%s261 + $0x50] sm:$0xff]
  %v273 = vld [vmem:[%s261 + $0x58] sm:$0xff]
  %v274 = vld [vmem:[%s261 + $0x60] sm:$0xff]
  %v275 = vld [vmem:[%s261 + $0x68] sm:$0xff]
  %v276 = vld [vmem:[%s261 + $0x70] sm:$0xff]
  %v277 = vld [vmem:[%s261 + $0x78] sm:$0xff]
  %278 = vmatprep.subr.mxu0 0.0
  %279 = vmatpush1.msra.mxu0 %v262
  %280 = vmatprep.subr.mxu0 0.0
  %281 = vmatpush1.msra.mxu0 %v263
  %282 = vmatprep.subr.mxu0 0.0
  %283 = vmatpush1.msra.mxu0 %v264
  %284 = vmatprep.subr.mxu0 0.0
  %285 = vmatpush1.msra.mxu0 %v265
  %286 = vmatprep.subr.mxu0 0.0
  %287 = vmatpush1.msra.mxu0 %v266
  %288 = vmatprep.subr.mxu0 0.0
  %289 = vmatpush1.msra.mxu0 %v267
  %290 = vmatprep.subr.mxu0 0.0
  %291 = vmatpush1.msra.mxu0 %v268
  %292 = vmatprep.subr.mxu0 0.0
  %293 = vmatpush1.msra.mxu0 %v269
  %294 = vmatprep.subr.mxu0 0.0
  %295 = vmatpush1.msra.mxu0 %v270
  %296 = vmatprep.subr.mxu0 0.0
  %297 = vmatpush1.msra.mxu0 %v271
  %298 = vmatprep.subr.mxu0 0.0
  %299 = vmatpush1.msra.mxu0 %v272
  %300 = vmatprep.subr.mxu0 0.0
  %301 = vmatpush1.msra.mxu0 %v273
  %302 = vmatprep.subr.mxu0 0.0
  %303 = vmatpush1.msra.mxu0 %v274
  %304 = vmatprep.subr.mxu0 0.0
  %305 = vmatpush1.msra.mxu0 %v275
  %306 = vmatprep.subr.mxu0 0.0
  %307 = vmatpush1.msra.mxu0 %v276
  %308 = vmatprep.subr.mxu0 0.0
  %309 = vmatpush1.msra.mxu0 %v277
  %310 = vmatprep.subr.mxu0 0.0
  %311 = vmatpush1.msra.mxu0 0.0
  %312 = vmatprep.subr.mxu0 0.0
  %313 = vmatpush1.msra.mxu0 0.0
  %314 = vmatprep.subr.mxu0 0.0
  %315 = vmatpush1.msra.mxu0 0.0
  %316 = vmatprep.subr.mxu0 0.0
  %317 = vmatpush1.msra.mxu0 0.0
  %318 = vmatprep.subr.mxu0 0.0
  %319 = vmatpush1.msra.mxu0 0.0
  %320 = vmatprep.subr.mxu0 0.0
  %321 = vmatpush1.msra.mxu0 0.0
  %322 = vmatprep.subr.mxu0 0.0
  %323 = vmatpush1.msra.mxu0 0.0
  %324 = vmatprep.subr.mxu0 0.0
  %325 = vmatpush1.msra.mxu0 0.0
  %326 = vmatprep.subr.mxu0 0.0
  %327 = vmatpush1.msra.mxu0 0.0
  %328 = vmatprep.subr.mxu0 0.0
  %329 = vmatpush1.msra.mxu0 0.0
  %330 = vmatprep.subr.mxu0 0.0
  %331 = vmatpush1.msra.mxu0 0.0
  %332 = vmatprep.subr.mxu0 0.0
  %333 = vmatpush1.msra.mxu0 0.0
  %334 = vmatprep.subr.mxu0 0.0
  %335 = vmatpush1.msra.mxu0 0.0
  %336 = vmatprep.subr.mxu0 0.0
  %337 = vmatpush1.msra.mxu0 0.0
  %338 = vmatprep.subr.mxu0 0.0
  %339 = vmatpush1.msra.mxu0 0.0
  %340 = vmatprep.subr.mxu0 0.0
  %341 = vmatpush1.msra.mxu0 0.0
  %342 = vmatprep.mubr.f32.mxu0 0.0
  %343 = vmatmul.mubr.f32.gmra.mrb[0].mxu0 %v38
  %v344 = vpop.f32.mrb[0].mxu0
  %v345 = vadd.f32 0.0, %v344
  %v346 = vpop.f32.mrb[0].mxu0
  %347 = vmatprep.mubr.f32.mxu0 0.0
  %348 = vmatmul.mubr.f32.gmra.mrb[0].mxu0 %v39
  %v349 = vpop.f32.mrb[0].mxu0
  %v350 = vadd.f32 0.0, %v349
  %v351 = vpop.f32.mrb[0].mxu0
  %352 = vmatprep.mubr.f32.mxu0 0.0
  %353 = vmatmul.mubr.f32.gmra.mrb[0].mxu0 %v40
  %v354 = vpop.f32.mrb[0].mxu0
  %v355 = vadd.f32 0.0, %v354
  %v356 = vpop.f32.mrb[0].mxu0
  %357 = vmatprep.mubr.f32.mxu0 0.0
  %358 = vmatmul.mubr.f32.gmra.mrb[0].mxu0 %v41
  %v359 = vpop.f32.mrb[0].mxu0
  %v360 = vadd.f32 0.0, %v359
  %v361 = vpop.f32.mrb[0].mxu0
  %362 = vdwg.mxu0
  %363 = vmatprep.subr.mxu0 0.0
  %364 = vmatpush1.msra.mxu0 %v245
  %365 = vmatprep.subr.mxu0 0.0
  %366 = vmatpush1.msra.mxu0 %v246
  %367 = vmatprep.subr.mxu0 0.0
  %368 = vmatpush1.msra.mxu0 %v247
  %369 = vmatprep.subr.mxu0 0.0
  %370 = vmatpush1.msra.mxu0 %v248
  %371 = vmatprep.subr.mxu0 0.0
  %372 = vmatpush1.msra.mxu0 %v249
  %373 = vmatprep.subr.mxu0 0.0
  %374 = vmatpush1.msra.mxu0 %v250
  %375 = vmatprep.subr.mxu0 0.0
  %376 = vmatpush1.msra.mxu0 %v251
  %377 = vmatprep.subr.mxu0 0.0
  %378 = vmatpush1.msra.mxu0 %v252
  %379 = vmatprep.subr.mxu0 0.0
  %380 = vmatpush1.msra.mxu0 %v253
  %381 = vmatprep.subr.mxu0 0.0
  %382 = vmatpush1.msra.mxu0 %v254
  %383 = vmatprep.subr.mxu0 0.0
  %384 = vmatpush1.msra.mxu0 %v255
  %385 = vmatprep.subr.mxu0 0.0
  %386 = vmatpush1.msra.mxu0 %v256
  %387 = vmatprep.subr.mxu0 0.0
  %388 = vmatpush1.msra.mxu0 %v257
  %389 = vmatprep.subr.mxu0 0.0
  %390 = vmatpush1.msra.mxu0 %v258
  %391 = vmatprep.subr.mxu0 0.0
  %392 = vmatpush1.msra.mxu0 %v259
  %393 = vmatprep.subr.mxu0 0.0
  %394 = vmatpush1.msra.mxu0 %v260
  %395 = vmatprep.subr.mxu0 0.0
  %396 = vmatpush1.msra.mxu0 0.0
  %397 = vmatprep.subr.mxu0 0.0
  %398 = vmatpush1.msra.mxu0 0.0
  %399 = vmatprep.subr.mxu0 0.0
  %400 = vmatpush1.msra.mxu0 0.0
  %401 = vmatprep.subr.mxu0 0.0
  %402 = vmatpush1.msra.mxu0 0.0
  %403 = vmatprep.subr.mxu0 0.0
  %404 = vmatpush1.msra.mxu0 0.0
  %405 = vmatprep.subr.mxu0 0.0
  %406 = vmatpush1.msra.mxu0 0.0
  %407 = vmatprep.subr.mxu0 0.0
  %408 = vmatpush1.msra.mxu0 0.0
  %409 = vmatprep.subr.mxu0 0.0
  %410 = vmatpush1.msra.mxu0 0.0
  %411 = vmatprep.subr.mxu0 0.0
  %412 = vmatpush1.msra.mxu0 0.0
  %413 = vmatprep.subr.mxu0 0.0
  %414 = vmatpush1.msra.mxu0 0.0
  %415 = vmatprep.subr.mxu0 0.0
  %416 = vmatpush1.msra.mxu0 0.0
  %417 = vmatprep.subr.mxu0 0.0
  %418 = vmatpush1.msra.mxu0 0.0
  %419 = vmatprep.subr.mxu0 0.0
  %420 = vmatpush1.msra.mxu0 0.0
  %421 = vmatprep.subr.mxu0 0.0
  %422 = vmatpush1.msra.mxu0 0.0
  %423 = vmatprep.subr.mxu0 0.0
  %424 = vmatpush1.msra.mxu0 0.0
  %425 = vmatprep.subr.mxu0 0.0
  %426 = vmatpush1.msra.mxu0 0.0
  %427 = vmatprep.mubr.f32.mxu0 0.0
  %428 = vmatmul.mubr.f32.gmra.mrb[0].mxu0 %v126
  %v429 = vpop.f32.mrb[0].mxu0
  %v430 = vadd.f32 %v345, %v429
  %v431 = vpop.f32.mrb[0].mxu0
  %432 = vmatprep.mubr.f32.mxu0 0.0
  %433 = vmatmul.mubr.f32.gmra.mrb[0].mxu0 %v131
  %v434 = vpop.f32.mrb[0].mxu0
  %v435 = vadd.f32 %v350, %v434
  %v436 = vpop.f32.mrb[0].mxu0
  %437 = vmatprep.mubr.f32.mxu0 0.0
  %438 = vmatmul.mubr.f32.gmra.mrb[0].mxu0 %v136
  %v439 = vpop.f32.mrb[0].mxu0
  %v440 = vadd.f32 %v355, %v439
  %v441 = vpop.f32.mrb[0].mxu0
  %442 = vmatprep.mubr.f32.mxu0 0.0
  %443 = vmatmul.mubr.f32.gmra.mrb[0].mxu0 %v141
  %v444 = vpop.f32.mrb[0].mxu0
  %v445 = vadd.f32 %v360, %v444
  %v446 = vpop.f32.mrb[0].mxu0
  %447 = vdwg.mxu0
  %s448 = scalar_lea.vmem %s3, 256
  %v449 = vld [vmem:[%s448] sm:$0xff]
  %v450 = vld [vmem:[%s448 + $0x8] sm:$0xff]
  %v451 = vld [vmem:[%s448 + $0x10] sm:$0xff]
  %v452 = vld [vmem:[%s448 + $0x18] sm:$0xff]
  %v453 = vld [vmem:[%s448 + $0x20] sm:$0xff]
  %v454 = vld [vmem:[%s448 + $0x28] sm:$0xff]
  %v455 = vld [vmem:[%s448 + $0x30] sm:$0xff]
  %v456 = vld [vmem:[%s448 + $0x38] sm:$0xff]
  %v457 = vld [vmem:[%s448 + $0x40] sm:$0xff]
  %v458 = vld [vmem:[%s448 + $0x48] sm:$0xff]
  %v459 = vld [vmem:[%s448 + $0x50] sm:$0xff]
  %v460 = vld [vmem:[%s448 + $0x58] sm:$0xff]
  %v461 = vld [vmem:[%s448 + $0x60] sm:$0xff]
  %v462 = vld [vmem:[%s448 + $0x68] sm:$0xff]
  %v463 = vld [vmem:[%s448 + $0x70] sm:$0xff]
  %v464 = vld [vmem:[%s448 + $0x78] sm:$0xff]
  %465 = vmatprep.subr.mxu0 0.0
  %466 = vmatpush1.msra.mxu0 %v449
  %467 = vmatprep.subr.mxu0 0.0
  %468 = vmatpush1.msra.mxu0 %v450
  %469 = vmatprep.subr.mxu0 0.0
  %470 = vmatpush1.msra.mxu0 %v451
  %471 = vmatprep.subr.mxu0 0.0
  %472 = vmatpush1.msra.mxu0 %v452
  %473 = vmatprep.subr.mxu0 0.0
  %474 = vmatpush1.msra.mxu0 %v453
  %475 = vmatprep.subr.mxu0 0.0
  %476 = vmatpush1.msra.mxu0 %v454
  %477 = vmatprep.subr.mxu0 0.0
  %478 = vmatpush1.msra.mxu0 %v455
  %479 = vmatprep.subr.mxu0 0.0
  %480 = vmatpush1.msra.mxu0 %v456
  %481 = vmatprep.subr.mxu0 0.0
  %482 = vmatpush1.msra.mxu0 %v457
  %483 = vmatprep.subr.mxu0 0.0
  %484 = vmatpush1.msra.mxu0 %v458
  %485 = vmatprep.subr.mxu0 0.0
  %486 = vmatpush1.msra.mxu0 %v459
  %487 = vmatprep.subr.mxu0 0.0
  %488 = vmatpush1.msra.mxu0 %v460
  %489 = vmatprep.subr.mxu0 0.0
  %490 = vmatpush1.msra.mxu0 %v461
  %491 = vmatprep.subr.mxu0 0.0
  %492 = vmatpush1.msra.mxu0 %v462
  %493 = vmatprep.subr.mxu0 0.0
  %494 = vmatpush1.msra.mxu0 %v463
  %495 = vmatprep.subr.mxu0 0.0
  %496 = vmatpush1.msra.mxu0 %v464
  %497 = vmatprep.subr.mxu0 0.0
  %498 = vmatpush1.msra.mxu0 0.0
  %499 = vmatprep.subr.mxu0 0.0
  %500 = vmatpush1.msra.mxu0 0.0
  %501 = vmatprep.subr.mxu0 0.0
  %502 = vmatpush1.msra.mxu0 0.0
  %503 = vmatprep.subr.mxu0 0.0
  %504 = vmatpush1.msra.mxu0 0.0
  %505 = vmatprep.subr.mxu0 0.0
  %506 = vmatpush1.msra.mxu0 0.0
  %507 = vmatprep.subr.mxu0 0.0
  %508 = vmatpush1.msra.mxu0 0.0
  %509 = vmatprep.subr.mxu0 0.0
  %510 = vmatpush1.msra.mxu0 0.0
  %511 = vmatprep.subr.mxu0 0.0
  %512 = vmatpush1.msra.mxu0 0.0
  %513 = vmatprep.subr.mxu0 0.0
  %514 = vmatpush1.msra.mxu0 0.0
  %515 = vmatprep.subr.mxu0 0.0
  %516 = vmatpush1.msra.mxu0 0.0
  %517 = vmatprep.subr.mxu0 0.0
  %518 = vmatpush1.msra.mxu0 0.0
  %519 = vmatprep.subr.mxu0 0.0
  %520 = vmatpush1.msra.mxu0 0.0
  %521 = vmatprep.subr.mxu0 0.0
  %522 = vmatpush1.msra.mxu0 0.0
  %523 = vmatprep.subr.mxu0 0.0
  %524 = vmatpush1.msra.mxu0 0.0
  %525 = vmatprep.subr.mxu0 0.0
  %526 = vmatpush1.msra.mxu0 0.0
  %527 = vmatprep.subr.mxu0 0.0
  %528 = vmatpush1.msra.mxu0 0.0
  %529 = vmatprep.mubr.f32.mxu0 0.0
  %530 = vmatmul.mubr.f32.gmra.mrb[0].mxu0 %v227
  %v531 = vpop.f32.mrb[0].mxu0
  %v532 = vadd.f32 0.0, %v531
  %v533 = vpop.f32.mrb[0].mxu0
  %534 = vmatprep.mubr.f32.mxu0 0.0
  %535 = vmatmul.mubr.f32.gmra.mrb[0].mxu0 %v232
  %v536 = vpop.f32.mrb[0].mxu0
  %v537 = vadd.f32 0.0, %v536
  %v538 = vpop.f32.mrb[0].mxu0
  %539 = vmatprep.mubr.f32.mxu0 0.0
  %540 = vmatmul.mubr.f32.gmra.mrb[0].mxu0 %v237
  %v541 = vpop.f32.mrb[0].mxu0
  %v542 = vadd.f32 0.0, %v541
  %v543 = vpop.f32.mrb[0].mxu0
  %544 = vmatprep.mubr.f32.mxu0 0.0
  %545 = vmatmul.mubr.f32.gmra.mrb[0].mxu0 %v242
  %v546 = vpop.f32.mrb[0].mxu0
  %v547 = vadd.f32 0.0, %v546
  %v548 = vpop.f32.mrb[0].mxu0
  %549 = vdwg.mxu0
  %v550 = vadd.f32 %v430, %v532
  %v551 = vadd.f32 %v435, %v537
  %v552 = vadd.f32 %v440, %v542
  %v553 = vadd.f32 %v445, %v547
  %v554 = vld [vmem:[%s4] sm:$0x1]
  %v555 = vld [vmem:[%s5] sm:$0x1]
  %v556 = vmul.f32 %v550, %v550
  %v557 = vmul.f32 %v551, %v551
  %v558 = vmul.f32 %v552, %v552
  %v559 = vmul.f32 %v553, %v553
  %v560 = vld [vmem:[%s9] sm:$0x3]
  %vm561 = vcmask 523264
  %v563 = vsel %vm561, %v560, 0
  %565 = vmatprep.subr.mxu0 0.0
  %566 = vmatpush1.msra.mxu0 %v550
  %567 = vmatprep.subr.mxu0 0.0
  %568 = vmatpush1.msra.mxu0 %v551
  %569 = vmatprep.subr.mxu0 0.0
  %570 = vmatpush1.msra.mxu0 %v552
  %571 = vmatprep.subr.mxu0 0.0
  %572 = vmatpush1.msra.mxu0 %v553
  %573 = vmatprep.subr.mxu0 0.0
  %574 = vmatpush1.msra.mxu0 %v556
  %575 = vmatprep.subr.mxu0 0.0
  %576 = vmatpush1.msra.mxu0 %v557
  %577 = vmatprep.subr.mxu0 0.0
  %578 = vmatpush1.msra.mxu0 %v558
  %579 = vmatprep.subr.mxu0 0.0
  %580 = vmatpush1.msra.mxu0 %v559
  %581 = vmatprep.subr.mxu0 0.0
  %582 = vmatpush1.msra.mxu0 0.0
  %583 = vmatprep.subr.mxu0 0.0
  %584 = vmatpush1.msra.mxu0 0.0
  %585 = vmatprep.subr.mxu0 0.0
  %586 = vmatpush1.msra.mxu0 0.0
  %587 = vmatprep.subr.mxu0 0.0
  %588 = vmatpush1.msra.mxu0 0.0
  %589 = vmatprep.subr.mxu0 0.0
  %590 = vmatpush1.msra.mxu0 0.0
  %591 = vmatprep.subr.mxu0 0.0
  %592 = vmatpush1.msra.mxu0 0.0
  %593 = vmatprep.subr.mxu0 0.0
  %594 = vmatpush1.msra.mxu0 0.0
  %595 = vmatprep.subr.mxu0 0.0
  %596 = vmatpush1.msra.mxu0 0.0
  %597 = vmatprep.subr.mxu0 0.0
  %598 = vmatpush1.msra.mxu0 0.0
  %599 = vmatprep.subr.mxu0 0.0
  %600 = vmatpush1.msra.mxu0 0.0
  %601 = vmatprep.subr.mxu0 0.0
  %602 = vmatpush1.msra.mxu0 0.0
  %603 = vmatprep.subr.mxu0 0.0
  %604 = vmatpush1.msra.mxu0 0.0
  %605 = vmatprep.subr.mxu0 0.0
  %606 = vmatpush1.msra.mxu0 0.0
  %607 = vmatprep.subr.mxu0 0.0
  %608 = vmatpush1.msra.mxu0 0.0
  %609 = vmatprep.subr.mxu0 0.0
  %610 = vmatpush1.msra.mxu0 0.0
  %611 = vmatprep.subr.mxu0 0.0
  %612 = vmatpush1.msra.mxu0 0.0
  %613 = vmatprep.subr.mxu0 0.0
  %614 = vmatpush1.msra.mxu0 0.0
  %615 = vmatprep.subr.mxu0 0.0
  %616 = vmatpush1.msra.mxu0 0.0
  %617 = vmatprep.subr.mxu0 0.0
  %618 = vmatpush1.msra.mxu0 0.0
  %619 = vmatprep.subr.mxu0 0.0
  %620 = vmatpush1.msra.mxu0 0.0
  %621 = vmatprep.subr.mxu0 0.0
  %622 = vmatpush1.msra.mxu0 0.0
  %623 = vmatprep.subr.mxu0 0.0
  %624 = vmatpush1.msra.mxu0 0.0
  %625 = vmatprep.subr.mxu0 0.0
  %626 = vmatpush1.msra.mxu0 0.0
  %627 = vmatprep.subr.mxu0 0.0
  %628 = vmatpush1.msra.mxu0 0.0
  %629 = vmatprep.mubr.f32.mxu0 0.0
  %630 = vmatmul.mubr.f32.gmra.mrb[0].mxu0 %v563
  %v631 = vpop.f32.mrb[0].mxu0
  %v632 = vadd.f32 0.0, %v631
  %v633 = vpop.f32.mrb[0].mxu0
  %634 = vdwg.mxu0
  %v635 = vld [vmem:[%s10] sm:$0xff]
  %v636 = vld [vmem:[%s10 + $0x8] sm:$0xff]
  %v637 = vld [vmem:[%s10 + $0x10] sm:$0xff]
  %v638 = vld [vmem:[%s10 + $0x18] sm:$0xff]
  %v639 = vld [vmem:[%s10 + $0x20] sm:$0xff]
  %v640 = vld [vmem:[%s10 + $0x28] sm:$0xff]
  %v641 = vld [vmem:[%s10 + $0x30] sm:$0xff]
  %v642 = vld [vmem:[%s10 + $0x38] sm:$0xff]
  %v643 = vld [vmem:[%s10 + $0x40] sm:$0xff]
  %v644 = vld [vmem:[%s10 + $0x48] sm:$0xff]
  %v645 = vld [vmem:[%s10 + $0x50] sm:$0xff]
  %v646 = vld [vmem:[%s10 + $0x58] sm:$0xff]
  %v647 = vld [vmem:[%s10 + $0x60] sm:$0xff]
  %v648 = vld [vmem:[%s10 + $0x68] sm:$0xff]
  %v649 = vld [vmem:[%s10 + $0x70] sm:$0xff]
  %v650 = vld [vmem:[%s10 + $0x78] sm:$0xff]
  %651 = vmatprep.subr.mxu0 0.0
  %652 = vmatpush1.msra.mxu0 %v635
  %653 = vmatprep.subr.mxu0 0.0
  %654 = vmatpush1.msra.mxu0 %v636
  %655 = vmatprep.subr.mxu0 0.0
  %656 = vmatpush1.msra.mxu0 %v637
  %657 = vmatprep.subr.mxu0 0.0
  %658 = vmatpush1.msra.mxu0 %v638
  %659 = vmatprep.subr.mxu0 0.0
  %660 = vmatpush1.msra.mxu0 %v639
  %661 = vmatprep.subr.mxu0 0.0
  %662 = vmatpush1.msra.mxu0 %v640
  %663 = vmatprep.subr.mxu0 0.0
  %664 = vmatpush1.msra.mxu0 %v641
  %665 = vmatprep.subr.mxu0 0.0
  %666 = vmatpush1.msra.mxu0 %v642
  %667 = vmatprep.subr.mxu0 0.0
  %668 = vmatpush1.msra.mxu0 %v643
  %669 = vmatprep.subr.mxu0 0.0
  %670 = vmatpush1.msra.mxu0 %v644
  %671 = vmatprep.subr.mxu0 0.0
  %672 = vmatpush1.msra.mxu0 %v645
  %673 = vmatprep.subr.mxu0 0.0
  %674 = vmatpush1.msra.mxu0 %v646
  %675 = vmatprep.subr.mxu0 0.0
  %676 = vmatpush1.msra.mxu0 %v647
  %677 = vmatprep.subr.mxu0 0.0
  %678 = vmatpush1.msra.mxu0 %v648
  %679 = vmatprep.subr.mxu0 0.0
  %680 = vmatpush1.msra.mxu0 %v649
  %681 = vmatprep.subr.mxu0 0.0
  %682 = vmatpush1.msra.mxu0 %v650
  %683 = vmatprep.subr.mxu0 0.0
  %684 = vmatpush1.msra.mxu0 0.0
  %685 = vmatprep.subr.mxu0 0.0
  %686 = vmatpush1.msra.mxu0 0.0
  %687 = vmatprep.subr.mxu0 0.0
  %688 = vmatpush1.msra.mxu0 0.0
  %689 = vmatprep.subr.mxu0 0.0
  %690 = vmatpush1.msra.mxu0 0.0
  %691 = vmatprep.subr.mxu0 0.0
  %692 = vmatpush1.msra.mxu0 0.0
  %693 = vmatprep.subr.mxu0 0.0
  %694 = vmatpush1.msra.mxu0 0.0
  %695 = vmatprep.subr.mxu0 0.0
  %696 = vmatpush1.msra.mxu0 0.0
  %697 = vmatprep.subr.mxu0 0.0
  %698 = vmatpush1.msra.mxu0 0.0
  %699 = vmatprep.subr.mxu0 0.0
  %700 = vmatpush1.msra.mxu0 0.0
  %701 = vmatprep.subr.mxu0 0.0
  %702 = vmatpush1.msra.mxu0 0.0
  %703 = vmatprep.subr.mxu0 0.0
  %704 = vmatpush1.msra.mxu0 0.0
  %705 = vmatprep.subr.mxu0 0.0
  %706 = vmatpush1.msra.mxu0 0.0
  %707 = vmatprep.subr.mxu0 0.0
  %708 = vmatpush1.msra.mxu0 0.0
  %709 = vmatprep.subr.mxu0 0.0
  %710 = vmatpush1.msra.mxu0 0.0
  %711 = vmatprep.subr.mxu0 0.0
  %712 = vmatpush1.msra.mxu0 0.0
  %713 = vmatprep.subr.mxu0 0.0
  %714 = vmatpush1.msra.mxu0 0.0
  %715 = vmatprep.mubr.f32.mxu0 0.0
  %716 = vmatmul.mubr.f32.gmra.mrb[0].mxu0 %v632
  %v717 = vpop.f32.mrb[0].mxu0
  %v718 = vadd.f32 0.0, %v717
  %v719 = vpop.f32.mrb[0].mxu0
  %720 = vdwg.mxu0
  %v721 = vmul.f32 %v718, %v718
  %v723 = vrot.slane %v721, 7
  %v725 = vsub.f32 %v718, %v723
  %v726 = vadd.f32 %v725, 1e-05
  %v727 = vrsqrt.pop %v726
  %v730 = vunpack.c.l.s4 1966171168
  %v731 = vunpack.c.0.s8 %v730
  %v732 = vlaneseq
  %v733 = vshrl.u32 %v732, 7
  %v734 = vsub.s32 %v731, %v733
  %v735 = vrot.slane %v727, %v734
  %v736 = vcombine.high %v735, %v735
  %v738 = vunpack.c.l.s4 1966171168
  %v739 = vunpack.c.0.s8 %v738
  %v740 = vlaneseq
  %v741 = vshrl.u32 %v740, 7
  %v742 = vsub.s32 %v739, %v741
  %v743 = vrot.slane %v736, %v742
  %v745 = vmul.f32 %v554, %v743
  %v746 = vmul.f32 %v718, %v745
  %v747 = vsub.f32 %v555, %v746
  %v749 = vlaneseq
  %v750 = vshrl.u32 %v749, 7
  %v751 = vsub.s32 0, %v750
  %v752 = vrot.slane %v745, %v751
  %v754 = vmul.f32 %v550, %v752
  %v755 = vmul.f32 %v551, %v752
  %v756 = vmul.f32 %v552, %v752
  %v757 = vmul.f32 %v553, %v752
  %v759 = vlaneseq
  %v760 = vshrl.u32 %v759, 7
  %v761 = vsub.s32 0, %v760
  %v762 = vrot.slane %v747, %v761
  %v764 = vadd.f32 %v754, %v762
  %v765 = vadd.f32 %v755, %v762
  %v766 = vadd.f32 %v756, %v762
  %v767 = vadd.f32 %v757, %v762
  %v768 = vmax.f32 %v764, 0.0
  %v769 = vmax.f32 %v765, 0.0
  %v770 = vmax.f32 %v766, 0.0
  %v771 = vmax.f32 %v767, 0.0
  %772 = vmatprep.subr.mxu0 0.0
  %773 = vmatpush1.msra.mxu0 %v768
  %774 = vmatprep.subr.mxu0 0.0
  %775 = vmatpush1.msra.mxu0 %v769
  %776 = vmatprep.subr.mxu0 0.0
  %777 = vmatpush1.msra.mxu0 %v770
  %778 = vmatprep.subr.mxu0 0.0
  %779 = vmatpush1.msra.mxu0 %v771
  %780 = vmatprep.subr.mxu0 0.0
  %781 = vmatpush1.msra.mxu0 0.0
  %782 = vmatprep.subr.mxu0 0.0
  %783 = vmatpush1.msra.mxu0 0.0
  %784 = vmatprep.subr.mxu0 0.0
  %785 = vmatpush1.msra.mxu0 0.0
  %786 = vmatprep.subr.mxu0 0.0
  %787 = vmatpush1.msra.mxu0 0.0
  %788 = vmatprep.subr.mxu0 0.0
  %789 = vmatpush1.msra.mxu0 0.0
  %790 = vmatprep.subr.mxu0 0.0
  %791 = vmatpush1.msra.mxu0 0.0
  %792 = vmatprep.subr.mxu0 0.0
  %793 = vmatpush1.msra.mxu0 0.0
  %794 = vmatprep.subr.mxu0 0.0
  %795 = vmatpush1.msra.mxu0 0.0
  %796 = vmatprep.subr.mxu0 0.0
  %797 = vmatpush1.msra.mxu0 0.0
  %798 = vmatprep.subr.mxu0 0.0
  %799 = vmatpush1.msra.mxu0 0.0
  %800 = vmatprep.subr.mxu0 0.0
  %801 = vmatpush1.msra.mxu0 0.0
  %802 = vmatprep.subr.mxu0 0.0
  %803 = vmatpush1.msra.mxu0 0.0
  %804 = vmatprep.subr.mxu0 0.0
  %805 = vmatpush1.msra.mxu0 0.0
  %806 = vmatprep.subr.mxu0 0.0
  %807 = vmatpush1.msra.mxu0 0.0
  %808 = vmatprep.subr.mxu0 0.0
  %809 = vmatpush1.msra.mxu0 0.0
  %810 = vmatprep.subr.mxu0 0.0
  %811 = vmatpush1.msra.mxu0 0.0
  %812 = vmatprep.subr.mxu0 0.0
  %813 = vmatpush1.msra.mxu0 0.0
  %814 = vmatprep.subr.mxu0 0.0
  %815 = vmatpush1.msra.mxu0 0.0
  %816 = vmatprep.subr.mxu0 0.0
  %817 = vmatpush1.msra.mxu0 0.0
  %818 = vmatprep.subr.mxu0 0.0
  %819 = vmatpush1.msra.mxu0 0.0
  %820 = vmatprep.subr.mxu0 0.0
  %821 = vmatpush1.msra.mxu0 0.0
  %822 = vmatprep.subr.mxu0 0.0
  %823 = vmatpush1.msra.mxu0 0.0
  %824 = vmatprep.subr.mxu0 0.0
  %825 = vmatpush1.msra.mxu0 0.0
  %826 = vmatprep.subr.mxu0 0.0
  %827 = vmatpush1.msra.mxu0 0.0
  %828 = vmatprep.subr.mxu0 0.0
  %829 = vmatpush1.msra.mxu0 0.0
  %830 = vmatprep.subr.mxu0 0.0
  %831 = vmatpush1.msra.mxu0 0.0
  %832 = vmatprep.subr.mxu0 0.0
  %833 = vmatpush1.msra.mxu0 0.0
  %834 = vmatprep.subr.mxu0 0.0
  %835 = vmatpush1.msra.mxu0 0.0
  %836 = vmatprep.mubr.f32.mxu0 0.0
  %837 = vmatmul.mubr.f32.gmra.mrb[0].mxu0 %v48
  %v838 = vpop.f32.mrb[0].mxu0
  %v839 = vadd.f32 0.0, %v838
  %v840 = vpop.f32.mrb[0].mxu0
  %841 = vmatprep.mubr.f32.mxu0 0.0
  %842 = vmatmul.mubr.f32.gmra.mrb[0].mxu0 %v51
  %v843 = vpop.f32.mrb[0].mxu0
  %v844 = vadd.f32 0.0, %v843
  %v845 = vpop.f32.mrb[0].mxu0
  %846 = vmatprep.mubr.f32.mxu0 0.0
  %847 = vmatmul.mubr.f32.gmra.mrb[0].mxu0 %v54
  %v848 = vpop.f32.mrb[0].mxu0
  %v849 = vadd.f32 0.0, %v848
  %v850 = vpop.f32.mrb[0].mxu0
  %851 = vmatprep.mubr.f32.mxu0 0.0
  %852 = vmatmul.mubr.f32.gmra.mrb[0].mxu0 %v57
  %v853 = vpop.f32.mrb[0].mxu0
  %v854 = vadd.f32 0.0, %v853
  %v855 = vpop.f32.mrb[0].mxu0
  %856 = vdwg.mxu0
  %857 = vmatprep.subr.mxu0 0.0
  %858 = vmatpush1.msra.mxu0 %v768
  %859 = vmatprep.subr.mxu0 0.0
  %860 = vmatpush1.msra.mxu0 %v769
  %861 = vmatprep.subr.mxu0 0.0
  %862 = vmatpush1.msra.mxu0 %v770
  %863 = vmatprep.subr.mxu0 0.0
  %864 = vmatpush1.msra.mxu0 %v771
  %865 = vmatprep.subr.mxu0 0.0
  %866 = vmatpush1.msra.mxu0 0.0
  %867 = vmatprep.subr.mxu0 0.0
  %868 = vmatpush1.msra.mxu0 0.0
  %869 = vmatprep.subr.mxu0 0.0
  %870 = vmatpush1.msra.mxu0 0.0
  %871 = vmatprep.subr.mxu0 0.0
  %872 = vmatpush1.msra.mxu0 0.0
  %873 = vmatprep.subr.mxu0 0.0
  %874 = vmatpush1.msra.mxu0 0.0
  %875 = vmatprep.subr.mxu0 0.0
  %876 = vmatpush1.msra.mxu0 0.0
  %877 = vmatprep.subr.mxu0 0.0
  %878 = vmatpush1.msra.mxu0 0.0
  %879 = vmatprep.subr.mxu0 0.0
  %880 = vmatpush1.msra.mxu0 0.0
  %881 = vmatprep.subr.mxu0 0.0
  %882 = vmatpush1.msra.mxu0 0.0
  %883 = vmatprep.subr.mxu0 0.0
  %884 = vmatpush1.msra.mxu0 0.0
  %885 = vmatprep.subr.mxu0 0.0
  %886 = vmatpush1.msra.mxu0 0.0
  %887 = vmatprep.subr.mxu0 0.0
  %888 = vmatpush1.msra.mxu0 0.0
  %889 = vmatprep.subr.mxu0 0.0
  %890 = vmatpush1.msra.mxu0 0.0
  %891 = vmatprep.subr.mxu0 0.0
  %892 = vmatpush1.msra.mxu0 0.0
  %893 = vmatprep.subr.mxu0 0.0
  %894 = vmatpush1.msra.mxu0 0.0
  %895 = vmatprep.subr.mxu0 0.0
  %896 = vmatpush1.msra.mxu0 0.0
  %897 = vmatprep.subr.mxu0 0.0
  %898 = vmatpush1.msra.mxu0 0.0
  %899 = vmatprep.subr.mxu0 0.0
  %900 = vmatpush1.msra.mxu0 0.0
  %901 = vmatprep.subr.mxu0 0.0
  %902 = vmatpush1.msra.mxu0 0.0
  %903 = vmatprep.subr.mxu0 0.0
  %904 = vmatpush1.msra.mxu0 0.0
  %905 = vmatprep.subr.mxu0 0.0
  %906 = vmatpush1.msra.mxu0 0.0
  %907 = vmatprep.subr.mxu0 0.0
  %908 = vmatpush1.msra.mxu0 0.0
  %909 = vmatprep.subr.mxu0 0.0
  %910 = vmatpush1.msra.mxu0 0.0
  %911 = vmatprep.subr.mxu0 0.0
  %912 = vmatpush1.msra.mxu0 0.0
  %913 = vmatprep.subr.mxu0 0.0
  %914 = vmatpush1.msra.mxu0 0.0
  %915 = vmatprep.subr.mxu0 0.0
  %916 = vmatpush1.msra.mxu0 0.0
  %917 = vmatprep.subr.mxu0 0.0
  %918 = vmatpush1.msra.mxu0 0.0
  %919 = vmatprep.subr.mxu0 0.0
  %920 = vmatpush1.msra.mxu0 0.0
  %921 = vmatprep.mubr.f32.mxu0 0.0
  %922 = vmatmul.mubr.f32.gmra.mrb[0].mxu0 %v149
  %v923 = vpop.f32.mrb[0].mxu0
  %v924 = vadd.f32 0.0, %v923
  %v925 = vpop.f32.mrb[0].mxu0
  %926 = vmatprep.mubr.f32.mxu0 0.0
  %927 = vmatmul.mubr.f32.gmra.mrb[0].mxu0 %v152
  %v928 = vpop.f32.mrb[0].mxu0
  %v929 = vadd.f32 0.0, %v928
  %v930 = vpop.f32.mrb[0].mxu0
  %931 = vmatprep.mubr.f32.mxu0 0.0
  %932 = vmatmul.mubr.f32.gmra.mrb[0].mxu0 %v155
  %v933 = vpop.f32.mrb[0].mxu0
  %v934 = vadd.f32 0.0, %v933
  %v935 = vpop.f32.mrb[0].mxu0
  %936 = vmatprep.mubr.f32.mxu0 0.0
  %937 = vmatmul.mubr.f32.gmra.mrb[0].mxu0 %v158
  %v938 = vpop.f32.mrb[0].mxu0
  %v939 = vadd.f32 0.0, %v938
  %v940 = vpop.f32.mrb[0].mxu0
  %941 = vdwg.mxu0
  %v942 = vld [vmem:[%s6] sm:$0xff]
  %v943 = vld [vmem:[%s6 + $0x8] sm:$0xff]
  %v944 = vld [vmem:[%s6 + $0x10] sm:$0xff]
  %v945 = vld [vmem:[%s6 + $0x18] sm:$0xff]
  %v946 = vld [vmem:[%s6 + $0x20] sm:$0xff]
  %v947 = vld [vmem:[%s6 + $0x28] sm:$0xff]
  %v948 = vld [vmem:[%s6 + $0x30] sm:$0xff]
  %v949 = vld [vmem:[%s6 + $0x38] sm:$0xff]
  %v950 = vld [vmem:[%s6 + $0x40] sm:$0xff]
  %v951 = vld [vmem:[%s6 + $0x48] sm:$0xff]
  %v952 = vld [vmem:[%s6 + $0x50] sm:$0xff]
  %v953 = vld [vmem:[%s6 + $0x58] sm:$0xff]
  %v954 = vld [vmem:[%s6 + $0x60] sm:$0xff]
  %v955 = vld [vmem:[%s6 + $0x68] sm:$0xff]
  %v956 = vld [vmem:[%s6 + $0x70] sm:$0xff]
  %v957 = vld [vmem:[%s6 + $0x78] sm:$0xff]
  %s958 = scalar_lea.vmem %s6, 128
  %v959 = vld [vmem:[%s958] sm:$0xff]
  %v960 = vld [vmem:[%s958 + $0x8] sm:$0xff]
  %v961 = vld [vmem:[%s958 + $0x10] sm:$0xff]
  %v962 = vld [vmem:[%s958 + $0x18] sm:$0xff]
  %v963 = vld [vmem:[%s958 + $0x20] sm:$0xff]
  %v964 = vld [vmem:[%s958 + $0x28] sm:$0xff]
  %v965 = vld [vmem:[%s958 + $0x30] sm:$0xff]
  %v966 = vld [vmem:[%s958 + $0x38] sm:$0xff]
  %v967 = vld [vmem:[%s958 + $0x40] sm:$0xff]
  %v968 = vld [vmem:[%s958 + $0x48] sm:$0xff]
  %v969 = vld [vmem:[%s958 + $0x50] sm:$0xff]
  %v970 = vld [vmem:[%s958 + $0x58] sm:$0xff]
  %v971 = vld [vmem:[%s958 + $0x60] sm:$0xff]
  %v972 = vld [vmem:[%s958 + $0x68] sm:$0xff]
  %v973 = vld [vmem:[%s958 + $0x70] sm:$0xff]
  %v974 = vld [vmem:[%s958 + $0x78] sm:$0xff]
  %975 = vmatprep.subr.mxu0 0.0
  %976 = vmatpush1.msra.mxu0 %v959
  %977 = vmatprep.subr.mxu0 0.0
  %978 = vmatpush1.msra.mxu0 %v960
  %979 = vmatprep.subr.mxu0 0.0
  %980 = vmatpush1.msra.mxu0 %v961
  %981 = vmatprep.subr.mxu0 0.0
  %982 = vmatpush1.msra.mxu0 %v962
  %983 = vmatprep.subr.mxu0 0.0
  %984 = vmatpush1.msra.mxu0 %v963
  %985 = vmatprep.subr.mxu0 0.0
  %986 = vmatpush1.msra.mxu0 %v964
  %987 = vmatprep.subr.mxu0 0.0
  %988 = vmatpush1.msra.mxu0 %v965
  %989 = vmatprep.subr.mxu0 0.0
  %990 = vmatpush1.msra.mxu0 %v966
  %991 = vmatprep.subr.mxu0 0.0
  %992 = vmatpush1.msra.mxu0 %v967
  %993 = vmatprep.subr.mxu0 0.0
  %994 = vmatpush1.msra.mxu0 %v968
  %995 = vmatprep.subr.mxu0 0.0
  %996 = vmatpush1.msra.mxu0 %v969
  %997 = vmatprep.subr.mxu0 0.0
  %998 = vmatpush1.msra.mxu0 %v970
  %999 = vmatprep.subr.mxu0 0.0
  %1000 = vmatpush1.msra.mxu0 %v971
  %1001 = vmatprep.subr.mxu0 0.0
  %1002 = vmatpush1.msra.mxu0 %v972
  %1003 = vmatprep.subr.mxu0 0.0
  %1004 = vmatpush1.msra.mxu0 %v973
  %1005 = vmatprep.subr.mxu0 0.0
  %1006 = vmatpush1.msra.mxu0 %v974
  %1007 = vmatprep.subr.mxu0 0.0
  %1008 = vmatpush1.msra.mxu0 0.0
  %1009 = vmatprep.subr.mxu0 0.0
  %1010 = vmatpush1.msra.mxu0 0.0
  %1011 = vmatprep.subr.mxu0 0.0
  %1012 = vmatpush1.msra.mxu0 0.0
  %1013 = vmatprep.subr.mxu0 0.0
  %1014 = vmatpush1.msra.mxu0 0.0
  %1015 = vmatprep.subr.mxu0 0.0
  %1016 = vmatpush1.msra.mxu0 0.0
  %1017 = vmatprep.subr.mxu0 0.0
  %1018 = vmatpush1.msra.mxu0 0.0
  %1019 = vmatprep.subr.mxu0 0.0
  %1020 = vmatpush1.msra.mxu0 0.0
  %1021 = vmatprep.subr.mxu0 0.0
  %1022 = vmatpush1.msra.mxu0 0.0
  %1023 = vmatprep.subr.mxu0 0.0
  %1024 = vmatpush1.msra.mxu0 0.0
  %1025 = vmatprep.subr.mxu0 0.0
  %1026 = vmatpush1.msra.mxu0 0.0
  %1027 = vmatprep.subr.mxu0 0.0
  %1028 = vmatpush1.msra.mxu0 0.0
  %1029 = vmatprep.subr.mxu0 0.0
  %1030 = vmatpush1.msra.mxu0 0.0
  %1031 = vmatprep.subr.mxu0 0.0
  %1032 = vmatpush1.msra.mxu0 0.0
  %1033 = vmatprep.subr.mxu0 0.0
  %1034 = vmatpush1.msra.mxu0 0.0
  %1035 = vmatprep.subr.mxu0 0.0
  %1036 = vmatpush1.msra.mxu0 0.0
  %1037 = vmatprep.subr.mxu0 0.0
  %1038 = vmatpush1.msra.mxu0 0.0
  %1039 = vmatprep.mubr.f32.mxu0 0.0
  %1040 = vmatmul.mubr.f32.gmra.mrb[0].mxu0 %v768
  %v1041 = vpop.f32.mrb[0].mxu0
  %v1042 = vadd.f32 0.0, %v1041
  %v1043 = vpop.f32.mrb[0].mxu0
  %1044 = vmatprep.mubr.f32.mxu0 0.0
  %1045 = vmatmul.mubr.f32.gmra.mrb[0].mxu0 %v769
  %v1046 = vpop.f32.mrb[0].mxu0
  %v1047 = vadd.f32 0.0, %v1046
  %v1048 = vpop.f32.mrb[0].mxu0
  %1049 = vmatprep.mubr.f32.mxu0 0.0
  %1050 = vmatmul.mubr.f32.gmra.mrb[0].mxu0 %v770
  %v1051 = vpop.f32.mrb[0].mxu0
  %v1052 = vadd.f32 0.0, %v1051
  %v1053 = vpop.f32.mrb[0].mxu0
  %1054 = vmatprep.mubr.f32.mxu0 0.0
  %1055 = vmatmul.mubr.f32.gmra.mrb[0].mxu0 %v771
  %v1056 = vpop.f32.mrb[0].mxu0
  %v1057 = vadd.f32 0.0, %v1056
  %v1058 = vpop.f32.mrb[0].mxu0
  %1059 = vdwg.mxu0
  %1060 = vmatprep.subr.mxu0 0.0
  %1061 = vmatpush1.msra.mxu0 %v942
  %1062 = vmatprep.subr.mxu0 0.0
  %1063 = vmatpush1.msra.mxu0 %v943
  %1064 = vmatprep.subr.mxu0 0.0
  %1065 = vmatpush1.msra.mxu0 %v944
  %1066 = vmatprep.subr.mxu0 0.0
  %1067 = vmatpush1.msra.mxu0 %v945
  %1068 = vmatprep.subr.mxu0 0.0
  %1069 = vmatpush1.msra.mxu0 %v946
  %1070 = vmatprep.subr.mxu0 0.0
  %1071 = vmatpush1.msra.mxu0 %v947
  %1072 = vmatprep.subr.mxu0 0.0
  %1073 = vmatpush1.msra.mxu0 %v948
  %1074 = vmatprep.subr.mxu0 0.0
  %1075 = vmatpush1.msra.mxu0 %v949
  %1076 = vmatprep.subr.mxu0 0.0
  %1077 = vmatpush1.msra.mxu0 %v950
  %1078 = vmatprep.subr.mxu0 0.0
  %1079 = vmatpush1.msra.mxu0 %v951
  %1080 = vmatprep.subr.mxu0 0.0
  %1081 = vmatpush1.msra.mxu0 %v952
  %1082 = vmatprep.subr.mxu0 0.0
  %1083 = vmatpush1.msra.mxu0 %v953
  %1084 = vmatprep.subr.mxu0 0.0
  %1085 = vmatpush1.msra.mxu0 %v954
  %1086 = vmatprep.subr.mxu0 0.0
  %1087 = vmatpush1.msra.mxu0 %v955
  %1088 = vmatprep.subr.mxu0 0.0
  %1089 = vmatpush1.msra.mxu0 %v956
  %1090 = vmatprep.subr.mxu0 0.0
  %1091 = vmatpush1.msra.mxu0 %v957
  %1092 = vmatprep.subr.mxu0 0.0
  %1093 = vmatpush1.msra.mxu0 0.0
  %1094 = vmatprep.subr.mxu0 0.0
  %1095 = vmatpush1.msra.mxu0 0.0
  %1096 = vmatprep.subr.mxu0 0.0
  %1097 = vmatpush1.msra.mxu0 0.0
  %1098 = vmatprep.subr.mxu0 0.0
  %1099 = vmatpush1.msra.mxu0 0.0
  %1100 = vmatprep.subr.mxu0 0.0
  %1101 = vmatpush1.msra.mxu0 0.0
  %1102 = vmatprep.subr.mxu0 0.0
  %1103 = vmatpush1.msra.mxu0 0.0
  %1104 = vmatprep.subr.mxu0 0.0
  %1105 = vmatpush1.msra.mxu0 0.0
  %1106 = vmatprep.subr.mxu0 0.0
  %1107 = vmatpush1.msra.mxu0 0.0
  %1108 = vmatprep.subr.mxu0 0.0
  %1109 = vmatpush1.msra.mxu0 0.0
  %1110 = vmatprep.subr.mxu0 0.0
  %1111 = vmatpush1.msra.mxu0 0.0
  %1112 = vmatprep.subr.mxu0 0.0
  %1113 = vmatpush1.msra.mxu0 0.0
  %1114 = vmatprep.subr.mxu0 0.0
  %1115 = vmatpush1.msra.mxu0 0.0
  %1116 = vmatprep.subr.mxu0 0.0
  %1117 = vmatpush1.msra.mxu0 0.0
  %1118 = vmatprep.subr.mxu0 0.0
  %1119 = vmatpush1.msra.mxu0 0.0
  %1120 = vmatprep.subr.mxu0 0.0
  %1121 = vmatpush1.msra.mxu0 0.0
  %1122 = vmatprep.subr.mxu0 0.0
  %1123 = vmatpush1.msra.mxu0 0.0
  %1124 = vmatprep.mubr.f32.mxu0 0.0
  %1125 = vmatmul.mubr.f32.gmra.mrb[0].mxu0 %v839
  %v1126 = vpop.f32.mrb[0].mxu0
  %v1127 = vadd.f32 %v1042, %v1126
  %v1128 = vpop.f32.mrb[0].mxu0
  %1129 = vmatprep.mubr.f32.mxu0 0.0
  %1130 = vmatmul.mubr.f32.gmra.mrb[0].mxu0 %v844
  %v1131 = vpop.f32.mrb[0].mxu0
  %v1132 = vadd.f32 %v1047, %v1131
  %v1133 = vpop.f32.mrb[0].mxu0
  %1134 = vmatprep.mubr.f32.mxu0 0.0
  %1135 = vmatmul.mubr.f32.gmra.mrb[0].mxu0 %v849
  %v1136 = vpop.f32.mrb[0].mxu0
  %v1137 = vadd.f32 %v1052, %v1136
  %v1138 = vpop.f32.mrb[0].mxu0
  %1139 = vmatprep.mubr.f32.mxu0 0.0
  %1140 = vmatmul.mubr.f32.gmra.mrb[0].mxu0 %v854
  %v1141 = vpop.f32.mrb[0].mxu0
  %v1142 = vadd.f32 %v1057, %v1141
  %v1143 = vpop.f32.mrb[0].mxu0
  %1144 = vdwg.mxu0
  %s1145 = scalar_lea.vmem %s6, 256
  %v1146 = vld [vmem:[%s1145] sm:$0xff]
  %v1147 = vld [vmem:[%s1145 + $0x8] sm:$0xff]
  %v1148 = vld [vmem:[%s1145 + $0x10] sm:$0xff]
  %v1149 = vld [vmem:[%s1145 + $0x18] sm:$0xff]
  %v1150 = vld [vmem:[%s1145 + $0x20] sm:$0xff]
  %v1151 = vld [vmem:[%s1145 + $0x28] sm:$0xff]
  %v1152 = vld [vmem:[%s1145 + $0x30] sm:$0xff]
  %v1153 = vld [vmem:[%s1145 + $0x38] sm:$0xff]
  %v1154 = vld [vmem:[%s1145 + $0x40] sm:$0xff]
  %v1155 = vld [vmem:[%s1145 + $0x48] sm:$0xff]
  %v1156 = vld [vmem:[%s1145 + $0x50] sm:$0xff]
  %v1157 = vld [vmem:[%s1145 + $0x58] sm:$0xff]
  %v1158 = vld [vmem:[%s1145 + $0x60] sm:$0xff]
  %v1159 = vld [vmem:[%s1145 + $0x68] sm:$0xff]
  %v1160 = vld [vmem:[%s1145 + $0x70] sm:$0xff]
  %v1161 = vld [vmem:[%s1145 + $0x78] sm:$0xff]
  %1162 = vmatprep.subr.mxu0 0.0
  %1163 = vmatpush1.msra.mxu0 %v1146
  %1164 = vmatprep.subr.mxu0 0.0
  %1165 = vmatpush1.msra.mxu0 %v1147
  %1166 = vmatprep.subr.mxu0 0.0
  %1167 = vmatpush1.msra.mxu0 %v1148
  %1168 = vmatprep.subr.mxu0 0.0
  %1169 = vmatpush1.msra.mxu0 %v1149
  %1170 = vmatprep.subr.mxu0 0.0
  %1171 = vmatpush1.msra.mxu0 %v1150
  %1172 = vmatprep.subr.mxu0 0.0
  %1173 = vmatpush1.msra.mxu0 %v1151
  %1174 = vmatprep.subr.mxu0 0.0
  %1175 = vmatpush1.msra.mxu0 %v1152
  %1176 = vmatprep.subr.mxu0 0.0
  %1177 = vmatpush1.msra.mxu0 %v1153
  %1178 = vmatprep.subr.mxu0 0.0
  %1179 = vmatpush1.msra.mxu0 %v1154
  %1180 = vmatprep.subr.mxu0 0.0
  %1181 = vmatpush1.msra.mxu0 %v1155
  %1182 = vmatprep.subr.mxu0 0.0
  %1183 = vmatpush1.msra.mxu0 %v1156
  %1184 = vmatprep.subr.mxu0 0.0
  %1185 = vmatpush1.msra.mxu0 %v1157
  %1186 = vmatprep.subr.mxu0 0.0
  %1187 = vmatpush1.msra.mxu0 %v1158
  %1188 = vmatprep.subr.mxu0 0.0
  %1189 = vmatpush1.msra.mxu0 %v1159
  %1190 = vmatprep.subr.mxu0 0.0
  %1191 = vmatpush1.msra.mxu0 %v1160
  %1192 = vmatprep.subr.mxu0 0.0
  %1193 = vmatpush1.msra.mxu0 %v1161
  %1194 = vmatprep.subr.mxu0 0.0
  %1195 = vmatpush1.msra.mxu0 0.0
  %1196 = vmatprep.subr.mxu0 0.0
  %1197 = vmatpush1.msra.mxu0 0.0
  %1198 = vmatprep.subr.mxu0 0.0
  %1199 = vmatpush1.msra.mxu0 0.0
  %1200 = vmatprep.subr.mxu0 0.0
  %1201 = vmatpush1.msra.mxu0 0.0
  %1202 = vmatprep.subr.mxu0 0.0
  %1203 = vmatpush1.msra.mxu0 0.0
  %1204 = vmatprep.subr.mxu0 0.0
  %1205 = vmatpush1.msra.mxu0 0.0
  %1206 = vmatprep.subr.mxu0 0.0
  %1207 = vmatpush1.msra.mxu0 0.0
  %1208 = vmatprep.subr.mxu0 0.0
  %1209 = vmatpush1.msra.mxu0 0.0
  %1210 = vmatprep.subr.mxu0 0.0
  %1211 = vmatpush1.msra.mxu0 0.0
  %1212 = vmatprep.subr.mxu0 0.0
  %1213 = vmatpush1.msra.mxu0 0.0
  %1214 = vmatprep.subr.mxu0 0.0
  %1215 = vmatpush1.msra.mxu0 0.0
  %1216 = vmatprep.subr.mxu0 0.0
  %1217 = vmatpush1.msra.mxu0 0.0
  %1218 = vmatprep.subr.mxu0 0.0
  %1219 = vmatpush1.msra.mxu0 0.0
  %1220 = vmatprep.subr.mxu0 0.0
  %1221 = vmatpush1.msra.mxu0 0.0
  %1222 = vmatprep.subr.mxu0 0.0
  %1223 = vmatpush1.msra.mxu0 0.0
  %1224 = vmatprep.subr.mxu0 0.0
  %1225 = vmatpush1.msra.mxu0 0.0
  %1226 = vmatprep.mubr.f32.mxu0 0.0
  %1227 = vmatmul.mubr.f32.gmra.mrb[0].mxu0 %v924
  %v1228 = vpop.f32.mrb[0].mxu0
  %v1229 = vadd.f32 0.0, %v1228
  %v1230 = vpop.f32.mrb[0].mxu0
  %1231 = vmatprep.mubr.f32.mxu0 0.0
  %1232 = vmatmul.mubr.f32.gmra.mrb[0].mxu0 %v929
  %v1233 = vpop.f32.mrb[0].mxu0
  %v1234 = vadd.f32 0.0, %v1233
  %v1235 = vpop.f32.mrb[0].mxu0
  %1236 = vmatprep.mubr.f32.mxu0 0.0
  %1237 = vmatmul.mubr.f32.gmra.mrb[0].mxu0 %v934
  %v1238 = vpop.f32.mrb[0].mxu0
  %v1239 = vadd.f32 0.0, %v1238
  %v1240 = vpop.f32.mrb[0].mxu0
  %1241 = vmatprep.mubr.f32.mxu0 0.0
  %1242 = vmatmul.mubr.f32.gmra.mrb[0].mxu0 %v939
  %v1243 = vpop.f32.mrb[0].mxu0
  %v1244 = vadd.f32 0.0, %v1243
  %v1245 = vpop.f32.mrb[0].mxu0
  %1246 = vdwg.mxu0
  %v1247 = vadd.f32 %v1127, %v1229
  %v1248 = vadd.f32 %v1132, %v1234
  %v1249 = vadd.f32 %v1137, %v1239
  %v1250 = vadd.f32 %v1142, %v1244
  %v1251 = vld [vmem:[%s7] sm:$0x1]
  %v1252 = vld [vmem:[%s8] sm:$0x1]
  %v1253 = vmul.f32 %v1247, %v1247
  %v1254 = vmul.f32 %v1248, %v1248
  %v1255 = vmul.f32 %v1249, %v1249
  %v1256 = vmul.f32 %v1250, %v1250
  %1257 = vmatprep.subr.mxu0 0.0
  %1258 = vmatpush1.msra.mxu0 %v1247
  %1259 = vmatprep.subr.mxu0 0.0
  %1260 = vmatpush1.msra.mxu0 %v1248
  %1261 = vmatprep.subr.mxu0 0.0
  %1262 = vmatpush1.msra.mxu0 %v1249
  %1263 = vmatprep.subr.mxu0 0.0
  %1264 = vmatpush1.msra.mxu0 %v1250
  %1265 = vmatprep.subr.mxu0 0.0
  %1266 = vmatpush1.msra.mxu0 %v1253
  %1267 = vmatprep.subr.mxu0 0.0
  %1268 = vmatpush1.msra.mxu0 %v1254
  %1269 = vmatprep.subr.mxu0 0.0
  %1270 = vmatpush1.msra.mxu0 %v1255
  %1271 = vmatprep.subr.mxu0 0.0
  %1272 = vmatpush1.msra.mxu0 %v1256
  %1273 = vmatprep.subr.mxu0 0.0
  %1274 = vmatpush1.msra.mxu0 0.0
  %1275 = vmatprep.subr.mxu0 0.0
  %1276 = vmatpush1.msra.mxu0 0.0
  %1277 = vmatprep.subr.mxu0 0.0
  %1278 = vmatpush1.msra.mxu0 0.0
  %1279 = vmatprep.subr.mxu0 0.0
  %1280 = vmatpush1.msra.mxu0 0.0
  %1281 = vmatprep.subr.mxu0 0.0
  %1282 = vmatpush1.msra.mxu0 0.0
  %1283 = vmatprep.subr.mxu0 0.0
  %1284 = vmatpush1.msra.mxu0 0.0
  %1285 = vmatprep.subr.mxu0 0.0
  %1286 = vmatpush1.msra.mxu0 0.0
  %1287 = vmatprep.subr.mxu0 0.0
  %1288 = vmatpush1.msra.mxu0 0.0
  %1289 = vmatprep.subr.mxu0 0.0
  %1290 = vmatpush1.msra.mxu0 0.0
  %1291 = vmatprep.subr.mxu0 0.0
  %1292 = vmatpush1.msra.mxu0 0.0
  %1293 = vmatprep.subr.mxu0 0.0
  %1294 = vmatpush1.msra.mxu0 0.0
  %1295 = vmatprep.subr.mxu0 0.0
  %1296 = vmatpush1.msra.mxu0 0.0
  %1297 = vmatprep.subr.mxu0 0.0
  %1298 = vmatpush1.msra.mxu0 0.0
  %1299 = vmatprep.subr.mxu0 0.0
  %1300 = vmatpush1.msra.mxu0 0.0
  %1301 = vmatprep.subr.mxu0 0.0
  %1302 = vmatpush1.msra.mxu0 0.0
  %1303 = vmatprep.subr.mxu0 0.0
  %1304 = vmatpush1.msra.mxu0 0.0
  %1305 = vmatprep.subr.mxu0 0.0
  %1306 = vmatpush1.msra.mxu0 0.0
  %1307 = vmatprep.subr.mxu0 0.0
  %1308 = vmatpush1.msra.mxu0 0.0
  %1309 = vmatprep.subr.mxu0 0.0
  %1310 = vmatpush1.msra.mxu0 0.0
  %1311 = vmatprep.subr.mxu0 0.0
  %1312 = vmatpush1.msra.mxu0 0.0
  %1313 = vmatprep.subr.mxu0 0.0
  %1314 = vmatpush1.msra.mxu0 0.0
  %1315 = vmatprep.subr.mxu0 0.0
  %1316 = vmatpush1.msra.mxu0 0.0
  %1317 = vmatprep.subr.mxu0 0.0
  %1318 = vmatpush1.msra.mxu0 0.0
  %1319 = vmatprep.subr.mxu0 0.0
  %1320 = vmatpush1.msra.mxu0 0.0
  %1321 = vmatprep.mubr.f32.mxu0 0.0
  %1322 = vmatmul.mubr.f32.gmra.mrb[0].mxu0 %v563
  %v1323 = vpop.f32.mrb[0].mxu0
  %v1324 = vadd.f32 0.0, %v1323
  %v1325 = vpop.f32.mrb[0].mxu0
  %1326 = vdwg.mxu0
  %1327 = vmatprep.subr.mxu0 0.0
  %1328 = vmatpush1.msra.mxu0 %v635
  %1329 = vmatprep.subr.mxu0 0.0
  %1330 = vmatpush1.msra.mxu0 %v636
  %1331 = vmatprep.subr.mxu0 0.0
  %1332 = vmatpush1.msra.mxu0 %v637
  %1333 = vmatprep.subr.mxu0 0.0
  %1334 = vmatpush1.msra.mxu0 %v638
  %1335 = vmatprep.subr.mxu0 0.0
  %1336 = vmatpush1.msra.mxu0 %v639
  %1337 = vmatprep.subr.mxu0 0.0
  %1338 = vmatpush1.msra.mxu0 %v640
  %1339 = vmatprep.subr.mxu0 0.0
  %1340 = vmatpush1.msra.mxu0 %v641
  %1341 = vmatprep.subr.mxu0 0.0
  %1342 = vmatpush1.msra.mxu0 %v642
  %1343 = vmatprep.subr.mxu0 0.0
  %1344 = vmatpush1.msra.mxu0 %v643
  %1345 = vmatprep.subr.mxu0 0.0
  %1346 = vmatpush1.msra.mxu0 %v644
  %1347 = vmatprep.subr.mxu0 0.0
  %1348 = vmatpush1.msra.mxu0 %v645
  %1349 = vmatprep.subr.mxu0 0.0
  %1350 = vmatpush1.msra.mxu0 %v646
  %1351 = vmatprep.subr.mxu0 0.0
  %1352 = vmatpush1.msra.mxu0 %v647
  %1353 = vmatprep.subr.mxu0 0.0
  %1354 = vmatpush1.msra.mxu0 %v648
  %1355 = vmatprep.subr.mxu0 0.0
  %1356 = vmatpush1.msra.mxu0 %v649
  %1357 = vmatprep.subr.mxu0 0.0
  %1358 = vmatpush1.msra.mxu0 %v650
  %1359 = vmatprep.subr.mxu0 0.0
  %1360 = vmatpush1.msra.mxu0 0.0
  %1361 = vmatprep.subr.mxu0 0.0
  %1362 = vmatpush1.msra.mxu0 0.0
  %1363 = vmatprep.subr.mxu0 0.0
  %1364 = vmatpush1.msra.mxu0 0.0
  %1365 = vmatprep.subr.mxu0 0.0
  %1366 = vmatpush1.msra.mxu0 0.0
  %1367 = vmatprep.subr.mxu0 0.0
  %1368 = vmatpush1.msra.mxu0 0.0
  %1369 = vmatprep.subr.mxu0 0.0
  %1370 = vmatpush1.msra.mxu0 0.0
  %1371 = vmatprep.subr.mxu0 0.0
  %1372 = vmatpush1.msra.mxu0 0.0
  %1373 = vmatprep.subr.mxu0 0.0
  %1374 = vmatpush1.msra.mxu0 0.0
  %1375 = vmatprep.subr.mxu0 0.0
  %1376 = vmatpush1.msra.mxu0 0.0
  %1377 = vmatprep.subr.mxu0 0.0
  %1378 = vmatpush1.msra.mxu0 0.0
  %1379 = vmatprep.subr.mxu0 0.0
  %1380 = vmatpush1.msra.mxu0 0.0
  %1381 = vmatprep.subr.mxu0 0.0
  %1382 = vmatpush1.msra.mxu0 0.0
  %1383 = vmatprep.subr.mxu0 0.0
  %1384 = vmatpush1.msra.mxu0 0.0
  %1385 = vmatprep.subr.mxu0 0.0
  %1386 = vmatpush1.msra.mxu0 0.0
  %1387 = vmatprep.subr.mxu0 0.0
  %1388 = vmatpush1.msra.mxu0 0.0
  %1389 = vmatprep.subr.mxu0 0.0
  %1390 = vmatpush1.msra.mxu0 0.0
  %1391 = vmatprep.mubr.f32.mxu0 0.0
  %1392 = vmatmul.mubr.f32.gmra.mrb[0].mxu0 %v1324
  %v1393 = vpop.f32.mrb[0].mxu0
  %v1394 = vadd.f32 0.0, %v1393
  %v1395 = vpop.f32.mrb[0].mxu0
  %1396 = vdwg.mxu0
  %v1397 = vmul.f32 %v1394, %v1394
  %v1399 = vrot.slane %v1397, 7
  %v1401 = vsub.f32 %v1394, %v1399
  %v1402 = vadd.f32 %v1401, 1e-05
  %v1403 = vrsqrt.pop %v1402
  %v1406 = vunpack.c.l.s4 1966171168
  %v1407 = vunpack.c.0.s8 %v1406
  %v1408 = vlaneseq
  %v1409 = vshrl.u32 %v1408, 7
  %v1410 = vsub.s32 %v1407, %v1409
  %v1411 = vrot.slane %v1403, %v1410
  %v1412 = vcombine.high %v1411, %v1411
  %v1414 = vunpack.c.l.s4 1966171168
  %v1415 = vunpack.c.0.s8 %v1414
  %v1416 = vlaneseq
  %v1417 = vshrl.u32 %v1416, 7
  %v1418 = vsub.s32 %v1415, %v1417
  %v1419 = vrot.slane %v1412, %v1418
  %v1421 = vmul.f32 %v1251, %v1419
  %v1422 = vmul.f32 %v1394, %v1421
  %v1423 = vsub.f32 %v1252, %v1422
  %v1425 = vlaneseq
  %v1426 = vshrl.u32 %v1425, 7
  %v1427 = vsub.s32 0, %v1426
  %v1428 = vrot.slane %v1421, %v1427
  %v1430 = vmul.f32 %v1247, %v1428
  %v1431 = vmul.f32 %v1248, %v1428
  %v1432 = vmul.f32 %v1249, %v1428
  %v1433 = vmul.f32 %v1250, %v1428
  %v1435 = vlaneseq
  %v1436 = vshrl.u32 %v1435, 7
  %v1437 = vsub.s32 0, %v1436
  %v1438 = vrot.slane %v1423, %v1437
  %v1440 = vadd.f32 %v1430, %v1438
  %v1441 = vadd.f32 %v1431, %v1438
  %v1442 = vadd.f32 %v1432, %v1438
  %v1443 = vadd.f32 %v1433, %v1438
  %v1444 = vmax.f32 %v1440, 0.0
  %v1445 = vmax.f32 %v1441, 0.0
  %v1446 = vmax.f32 %v1442, 0.0
  %v1447 = vmax.f32 %v1443, 0.0
  %v1448 = vadd.f32 %v38, %v1444
  %v1449 = vadd.f32 %v39, %v1445
  %v1450 = vadd.f32 %v40, %v1446
  %v1451 = vadd.f32 %v41, %v1447
  %v1452 = vmax.f32 %v1448, 0.0
  %v1453 = vmax.f32 %v1449, 0.0
  %v1454 = vmax.f32 %v1450, 0.0
  %v1455 = vmax.f32 %v1451, 0.0
  %1456 = vst [vmem:[%s11] sm:$0xff] %v1452
  %1457 = vst [vmem:[%s11 + $0x8] sm:$0xff] %v1453
  %1458 = vst [vmem:[%s11 + $0x10] sm:$0xff] %v1454
  %1459 = vst [vmem:[%s11 + $0x18] sm:$0xff] %v1455
  // Predicated region
  $region46: #{residual_block.1} parent=0 // pred_check
    _
  $region47: #{residual_block.1} parent=0 // pred_check_branch
    %1461 = sbr.rel (0) target = $region49
  $region48: #{residual_block.1} parent=0 // pred_region
    _
  $region49: #{residual_block.1} parent=0 // pred_fallthru
    _
  // Predicated region
  $region50: #{residual_block.1} parent=0 // pred_check
    _
  $region51: #{residual_block.1} parent=0 // pred_check_branch
    %1463 = sbr.rel (0) target = $region53
  $region52: #{residual_block.1} parent=0 // pred_region
    _
  $region53: #{residual_block.1} parent=0 // pred_fallthru
    _

</llo_original>
